<compile_context>
chip_gen: v7x
topology: tpu7x:2x2x1
jax: 0.10.0
libtpu: 0.0.40
codegen_flags: <defaults>
</compile_context>

<pallas_src>
import math
from functools import partial

import jax
import jax.numpy as jnp
from jax.experimental import pallas as pl
from jax.experimental.pallas import tpu as pltpu

LANE = 128


def _round_up(x, m):
    return (x + m - 1) // m * m


# ---------------------------------------------------------------------------
# Kernel: one (row-tile, layer) grid cell per invocation.
# ---------------------------------------------------------------------------
def decoder_kernel(x_ref, enc_ref, hsum_ref,
                   wqkv_s_ref, wfc_s_ref, bfc_s_ref,
                   wq_e_ref, wkv_e_ref, wfc_e_ref, bfc_e_ref,
                   g1_ref, bn1_ref, g2_ref, bn2_ref, g3_ref, bn3_ref,
                   w1_ref, b1_ref, w2_ref, b2_ref,
                   o_ref, x_state,
                   *, hid_dim, hid_pad, head_dim, eps):
    layer = pl.program_id(1)
    n_layers = pl.num_programs(1)
    D, Dp = hid_dim, hid_pad
    n_pad = Dp - D
    inv_sqrt = 1.0 / math.sqrt(D)
    inv_hd = 1.0 / head_dim
    inv_D = 1.0 / D

    hsum = hsum_ref[...]          # (Dp, Dp) bf16 per-head block-diag ones (host-built)

    @pl.when(layer == 0)
    def _():
        x_state[...] = x_ref[...].astype(jnp.float32)

    def attention(qh, kh, vh, wfc, bfc):
        # scores = (q_h * k_h) / sqrt(hid_dim); softmax over head_dim segments.
        scores = qh * kh * inv_sqrt
        # Per-head shift = per-head mean via MXU matmul with the block-diag ones.
        # Softmax is invariant to any per-head constant shift; mean-centering
        # guarantees sum(exp) >= head_dim, so no head can underflow to zero.
        shift = jnp.dot(scores.astype(jnp.bfloat16), hsum,
                        preferred_element_type=jnp.float32) * inv_hd
        e = jnp.exp(scores - shift)
        denom = jnp.dot(e.astype(jnp.bfloat16), hsum,
                        preferred_element_type=jnp.float32)
        # denom >= head_dim on real lanes; the clamp only protects zero-padded
        # lanes (whose v is exactly 0 anyway).
        denom = jnp.maximum(denom, 1e-6)
        probs = e / denom                                   # exact divide (EUP/VPU slack)
        attn = (vh * probs).astype(jnp.bfloat16)
        return jnp.dot(attn, wfc, preferred_element_type=jnp.float32) + bfc

    def add_ln(a, b, g, beta):
        z = a + b
        mean = jnp.sum(z, axis=-1, keepdims=True) * inv_D   # padded lanes of z are 0
        d = z - mean
        ssq = jnp.sum(d * d, axis=-1, keepdims=True)
        if n_pad:                                           # remove padded-lane term
            ssq = ssq - n_pad * (mean * mean)
        var = ssq * inv_D                                   # two-pass (no cancellation)
        # gamma/beta are zero-padded, so padded lanes come out exactly 0 again.
        return d * jax.lax.rsqrt(var + eps) * g + beta

    x = x_state[...]                                        # (TM, Dp) f32 carry
    enc_bf = enc_ref[...]                                   # (TM, Dp) bf16

    # ---- self attention + residual + norm1 ----
    qkv = jnp.dot(x.astype(jnp.bfloat16), wqkv_s_ref[...],
                  preferred_element_type=jnp.float32)       # (TM, 3Dp), 128-aligned slices
    t2 = attention(qkv[:, :Dp], qkv[:, Dp:2 * Dp], qkv[:, 2 * Dp:],
                   wfc_s_ref[...], bfc_s_ref[...])
    x = add_ln(x, t2, g1_ref[...], bn1_ref[...])

    # ---- encoder attention + residual + norm2 ----
    qh = jnp.dot(x.astype(jnp.bfloat16), wq_e_ref[...],
                 preferred_element_type=jnp.float32)        # (TM, Dp)
    kv = jnp.dot(enc_bf, wkv_e_ref[...],
                 preferred_element_type=jnp.float32)        # (TM, 2Dp)
    t2 = attention(qh, kv[:, :Dp], kv[:, Dp:], wfc_e_ref[...], bfc_e_ref[...])
    x = add_ln(x, t2, g2_ref[...], bn2_ref[...])

    # ---- 1x1-conv FFN (pointwise => row matmuls) + residual + norm3 ----
    h = jnp.dot(x.astype(jnp.bfloat16), w1_ref[...],
                preferred_element_type=jnp.float32) + b1_ref[...]
    h = jnp.maximum(h, 0.0).astype(jnp.bfloat16)
    y = jnp.dot(h, w2_ref[...], preferred_element_type=jnp.float32) + b2_ref[...]
    x = add_ln(x, y, g3_ref[...], bn3_ref[...])

    x_state[...] = x

    @pl.when(layer == n_layers - 1)
    def _():
        o_ref[...] = x.astype(o_ref.dtype)


_PACKED = ("Wqkv_s", "Wfc_s", "bfc_s", "Wq_e", "Wkv_e", "Wfc_e", "bfc_e",
           "g1", "bn1", "g2", "bn2", "g3", "bn3", "W1", "b1", "W2", "b2")


def _vmem_limit_bytes():
    # v5e/v6e have 128 MiB physical VMEM, v7x only 64 MiB; the default scoped
    # limits (16/32 MiB) needlessly constrain tiling on the big parts.
    try:
        cap = int(pltpu.get_tpu_info().vmem_capacity_bytes)
    except Exception:
        cap = 64 * 1024 * 1024
    return max(32 * 1024 * 1024, min(cap * 3 // 4, 100 * 1024 * 1024))


def decoder_forward(dec_inputs, enc_outputs, packed, n_heads,
                    *, tm_target=512, eps=1e-5, out_dtype=jnp.bfloat16):
    S, NB, D = dec_inputs.shape
    assert enc_outputs.shape == dec_inputs.shape
    assert D % n_heads == 0
    head_dim = D // n_heads

    weights = [packed[n] for n in _PACKED]
    hsum = packed["head_sum"]
    n_layers = int(packed["Wqkv_s"].shape[0])
    Dp = int(hsum.shape[-1])
    PFp = int(packed["W1"].shape[-1])

    M = S * NB
    # Big tiles amortize per-step overhead, but keep >= 2 row tiles whenever
    # possible so the "parallel" axis can shard across both TensorCores (v7x).
    TM = min(tm_target, max(8, _round_up(pl.cdiv(M, 2), 8)))
    M_pad = _round_up(M, TM)

    def pad_rows(a):
        a = a.reshape(M, D)
        return jnp.pad(a, ((0, M_pad - M), (0, Dp - D))).astype(jnp.bfloat16)

    x = pad_rows(dec_inputs)
    enc = pad_rows(enc_outputs)

    act_spec = pl.BlockSpec((TM, Dp), lambda i, l: (i, 0))
    hsum_spec = pl.BlockSpec((Dp, Dp), lambda i, l: (0, 0))

    def layer_spec(arr):
        # One layer's slice per inner grid step: weight VMEM is capped at
        # ~2 layer-blocks (double buffered) instead of all layers resident.
        return pl.BlockSpec((None,) + tuple(arr.shape[1:]),
                            lambda i, l: (l, 0, 0))

    flops = 2 * M_pad * n_layers * (12 * Dp * Dp + 2 * Dp * PFp)
    transcendentals = M_pad * n_layers * (2 * Dp + 3)
    bytes_accessed = int(x.nbytes) + int(enc.nbytes) + int(hsum.nbytes) \
        + M_pad * Dp * 2 + sum(int(w.nbytes) for w in weights)

    kern = partial(decoder_kernel, hid_dim=D, hid_pad=Dp,
                   head_dim=head_dim, eps=eps)
    out = pl.pallas_call(
        kern,
        out_shape=jax.ShapeDtypeStruct((M_pad, Dp), out_dtype),
        grid=(M_pad // TM, n_layers),
        in_specs=[act_spec, act_spec, hsum_spec] + [layer_spec(w) for w in weights],
        out_specs=pl.BlockSpec((TM, Dp), lambda i, l: (i, 0)),
        scratch_shapes=[pltpu.VMEM((TM, Dp), jnp.float32)],   # f32 layer-to-layer carry
        compiler_params=pltpu.CompilerParams(
            dimension_semantics=("parallel", "arbitrary"),
            vmem_limit_bytes=_vmem_limit_bytes()),
        cost_estimate=pl.CostEstimate(flops=int(flops),
                                      transcendentals=int(transcendentals),
                                      bytes_accessed=int(bytes_accessed)),
    )(x, enc, hsum, *weights)

    out = out[:M, :D].reshape(S, NB, D)
    # torch.squeeze(dec_inputs, dim=0): drop dim 0 only if it is size 1.
    if out.shape[0] == 1:
        out = jnp.squeeze(out, axis=0)
    return out            # bf16; cast downstream if f32 is required


# ---------------------------------------------------------------------------
# Synthetic parameters in the torch module's native layout + packing.
# ---------------------------------------------------------------------------
def init_decoder(key, hid_dim, n_layers, pf_dim):
    def xavier(k, shape):
        fan_in, fan_out = shape
        lim = math.sqrt(6.0 / (fan_in + fan_out))
        return jax.random.uniform(k, shape, jnp.float32, -lim, lim)

    def bias(k, n, fan_in):
        b = 1.0 / math.sqrt(fan_in)
        return jax.random.uniform(k, (n,), jnp.float32, -b, b)

    D, PF = hid_dim, pf_dim
    layers = []
    for lk in jax.random.split(key, n_layers):
        ks = jax.random.split(lk, 14)
        layers.append(dict(
            self_Wq=xavier(ks[0], (D, D)), self_Wk=xavier(ks[1], (D, D)),
            self_Wv=xavier(ks[2], (D, D)),
            self_fc_w=xavier(ks[3], (D, D)), self_fc_b=bias(ks[4], D, D),
            enc_Wq=xavier(ks[5], (D, D)), enc_Wk=xavier(ks[6], (D, D)),
            enc_Wv=xavier(ks[7], (D, D)),
            enc_fc_w=xavier(ks[8], (D, D)), enc_fc_b=bias(ks[9], D, D),
            g1=jnp.ones((D,), jnp.float32), b1=jnp.zeros((D,), jnp.float32),
            g2=jnp.ones((D,), jnp.float32), b2=jnp.zeros((D,), jnp.float32),
            g3=jnp.ones((D,), jnp.float32), b3=jnp.zeros((D,), jnp.float32),
            conv1_w=xavier(ks[10], (PF, D)), conv1_b=bias(ks[11], PF, D),
            conv2_w=xavier(ks[12], (D, PF)), conv2_b=bias(ks[13], D, PF),
        ))
    return layers


def pack_params(raw_layers, n_heads, hid_dim, pf_dim):
    """Wrapper-side layout plumbing: transpose nn.Linear/Conv weights to x@W
    form, fuse QKV / KV, zero-pad every matmul dimension to a 128-lane multiple,
    cast matmul operands to bf16 (biases / LN params stay f32), stack layers,
    and build the per-head block-diagonal ones matrix once on the host."""
    D, PF = hid_dim, pf_dim
    Dp, PFp = _round_up(D, LANE), _round_up(PF, LANE)

    def pad2(w, r, c):
        return jnp.pad(w, ((0, r - w.shape[0]), (0, c - w.shape[1])))

    def vec(v, c):
        return jnp.pad(v.reshape(1, -1),
                       ((0, 0), (0, c - v.shape[-1]))).astype(jnp.float32)

    per_layer = []
    for p in raw_layers:
        qkv = jnp.concatenate([pad2(p["self_Wq"], Dp, Dp),
                               pad2(p["self_Wk"], Dp, Dp),
                               pad2(p["self_Wv"], Dp, Dp)], axis=1)
        kv = jnp.concatenate([pad2(p["enc_Wk"], Dp, Dp),
                              pad2(p["enc_Wv"], Dp, Dp)], axis=1)
        per_layer.append(dict(
            Wqkv_s=qkv.astype(jnp.bfloat16),
            Wfc_s=pad2(p["self_fc_w"].T, Dp, Dp).astype(jnp.bfloat16),
            bfc_s=vec(p["self_fc_b"], Dp),
            Wq_e=pad2(p["enc_Wq"], Dp, Dp).astype(jnp.bfloat16),
            Wkv_e=kv.astype(jnp.bfloat16),
            Wfc_e=pad2(p["enc_fc_w"].T, Dp, Dp).astype(jnp.bfloat16),
            bfc_e=vec(p["enc_fc_b"], Dp),
            g1=vec(p["g1"], Dp), bn1=vec(p["b1"], Dp),
            g2=vec(p["g2"], Dp), bn2=vec(p["b2"], Dp),
            g3=vec(p["g3"], Dp), bn3=vec(p["b3"], Dp),
            W1=pad2(p["conv1_w"].T, Dp, PFp).astype(jnp.bfloat16),
            b1=vec(p["conv1_b"], PFp),
            W2=pad2(p["conv2_w"].T, PFp, Dp).astype(jnp.bfloat16),
            b2=vec(p["conv2_b"], Dp),
        ))
    packed = {k: jnp.stack([lyr[k] for lyr in per_layer], axis=0)
              for k in per_layer[0]}

    # Per-head block-diagonal ones, restricted to the real (unpadded) lanes.
    hd = D // n_heads
    idx = jnp.arange(Dp)
    same_head = (idx[:, None] // hd) == (idx[None, :] // hd)
    valid = idx < D
    packed["head_sum"] = (same_head & valid[:, None]
                          & valid[None, :]).astype(jnp.bfloat16)
    return packed


# ---------------------------------------------------------------------------
# Pure-JAX f32 reference mirroring the PyTorch module (eval-mode forward).
# ---------------------------------------------------------------------------
def decoder_reference(dec_inputs, enc_outputs, raw_layers, n_heads, eps=1e-5):
    D = dec_inputs.shape[-1]
    hd = D // n_heads
    inv_sqrt = 1.0 / math.sqrt(D)

    def mha(q, k, v, Wq, Wk, Wv, fc_w, fc_b):
        qh, kh, vh = q @ Wq, k @ Wk, v @ Wv
        s = qh.shape[:-1] + (n_heads, hd)
        scores = (qh.reshape(s) * kh.reshape(s)) * inv_sqrt
        probs = jax.nn.softmax(scores, axis=-1)
        o = (vh.reshape(s) * probs).reshape(qh.shape)
        return o @ fc_w.T + fc_b

    def ln(z, g, b):
        m = jnp.mean(z, axis=-1, keepdims=True)
        v = jnp.mean((z - m) ** 2, axis=-1, keepdims=True)
        return (z - m) / jnp.sqrt(v + eps) * g + b

    x = dec_inputs
    for p in raw_layers:
        t2 = mha(x, x, x, p["self_Wq"], p["self_Wk"], p["self_Wv"],
                 p["self_fc_w"], p["self_fc_b"])
        x = ln(x + t2, p["g1"], p["b1"])
        t2 = mha(x, enc_outputs, enc_outputs, p["enc_Wq"], p["enc_Wk"],
                 p["enc_Wv"], p["enc_fc_w"], p["enc_fc_b"])
        x = ln(x + t2, p["g2"], p["b2"])
        h = jnp.maximum(x @ p["conv1_w"].T + p["conv1_b"], 0.0)
        y = h @ p["conv2_w"].T + p["conv2_b"]
        x = ln(x + y, p["g3"], p["b3"])
    return x[0] if x.shape[0] == 1 else x


if __name__ == "__main__":
    # small shapes consistent with the module
    hid_dim, n_layers, n_heads, pf_dim = 32, 2, 4, 64
    n_nodes, batch_size, steps = 8, 2, 1
    NB = n_nodes * batch_size

    key = jax.random.PRNGKey(0)
    k_par, k_dec, k_enc = jax.random.split(key, 3)

    raw_layers = init_decoder(k_par, hid_dim, n_layers, pf_dim)
    packed = pack_params(raw_layers, n_heads, hid_dim, pf_dim)

    dec_inputs = jax.random.normal(k_dec, (steps, NB, hid_dim), jnp.float32)
    enc_outputs = jax.random.normal(k_enc, (steps, NB, hid_dim), jnp.float32)

    out = decoder_forward(dec_inputs, enc_outputs, packed, n_heads)
    out = jax.block_until_ready(out)

    ref = decoder_reference(dec_inputs, enc_outputs, raw_layers, n_heads)
    assert out.shape == ref.shape == (NB, hid_dim), (out.shape, ref.shape)
    assert bool(jnp.all(jnp.isfinite(out)))
    out_f32 = out.astype(jnp.float32)
    rel = float(jnp.linalg.norm(out_f32 - ref) / jnp.linalg.norm(ref))
    assert rel < 5e-2, f"relative L2 error vs reference too high: {rel}"
    print("KERNEL_OK")
</pallas_src>

<mosaic_0001>
module attributes {stable_mosaic.version = 11 : i64} {
  func.func @decoder_kernel(%arg0: i32, %arg1: i32, %arg2: memref<8x128xbf16, #tpu.memory_space<vmem>>, %arg3: memref<8x128xbf16, #tpu.memory_space<vmem>>, %arg4: memref<128x128xbf16, #tpu.memory_space<vmem>>, %arg5: memref<1x128x384xbf16, #tpu.memory_space<vmem>>, %arg6: memref<1x128x128xbf16, #tpu.memory_space<vmem>>, %arg7: memref<1x1x128xf32, #tpu.memory_space<vmem>>, %arg8: memref<1x128x128xbf16, #tpu.memory_space<vmem>>, %arg9: memref<1x128x256xbf16, #tpu.memory_space<vmem>>, %arg10: memref<1x128x128xbf16, #tpu.memory_space<vmem>>, %arg11: memref<1x1x128xf32, #tpu.memory_space<vmem>>, %arg12: memref<1x1x128xf32, #tpu.memory_space<vmem>>, %arg13: memref<1x1x128xf32, #tpu.memory_space<vmem>>, %arg14: memref<1x1x128xf32, #tpu.memory_space<vmem>>, %arg15: memref<1x1x128xf32, #tpu.memory_space<vmem>>, %arg16: memref<1x1x128xf32, #tpu.memory_space<vmem>>, %arg17: memref<1x1x128xf32, #tpu.memory_space<vmem>>, %arg18: memref<1x128x128xbf16, #tpu.memory_space<vmem>>, %arg19: memref<1x1x128xf32, #tpu.memory_space<vmem>>, %arg20: memref<1x128x128xbf16, #tpu.memory_space<vmem>>, %arg21: memref<1x1x128xf32, #tpu.memory_space<vmem>>, %arg22: memref<8x128xbf16, #tpu.memory_space<vmem>>, %arg23: memref<8x128xf32, #tpu.memory_space<vmem>>) attributes {dimension_semantics = [#tpu.dimension_semantics<parallel>, #tpu.dimension_semantics<arbitrary>], iteration_bounds = array<i64: 2, 2>, scalar_prefetch = 0 : i64, scratch_operands = 1 : i64, tpu.core_type = #tpu.core_type<tc>, window_params = [{transform_indices = @transform_0, window_bounds = array<i64: 8, 128>}, {transform_indices = @transform_1, window_bounds = array<i64: 8, 128>}, {pipeline_mode = #tpu.pipeline_mode<synchronous>, transform_indices = @transform_2, window_bounds = array<i64: 128, 128>}, {transform_indices = @transform_3, window_bounds = array<i64: 1, 128, 384>}, {transform_indices = @transform_4, window_bounds = array<i64: 1, 128, 128>}, {transform_indices = @transform_5, window_bounds = array<i64: 1, 1, 128>}, {transform_indices = @transform_6, window_bounds = array<i64: 1, 128, 128>}, {transform_indices = @transform_7, window_bounds = array<i64: 1, 128, 256>}, {transform_indices = @transform_8, window_bounds = array<i64: 1, 128, 128>}, {transform_indices = @transform_9, window_bounds = array<i64: 1, 1, 128>}, {transform_indices = @transform_10, window_bounds = array<i64: 1, 1, 128>}, {transform_indices = @transform_11, window_bounds = array<i64: 1, 1, 128>}, {transform_indices = @transform_12, window_bounds = array<i64: 1, 1, 128>}, {transform_indices = @transform_13, window_bounds = array<i64: 1, 1, 128>}, {transform_indices = @transform_14, window_bounds = array<i64: 1, 1, 128>}, {transform_indices = @transform_15, window_bounds = array<i64: 1, 1, 128>}, {transform_indices = @transform_16, window_bounds = array<i64: 1, 128, 128>}, {transform_indices = @transform_17, window_bounds = array<i64: 1, 1, 128>}, {transform_indices = @transform_18, window_bounds = array<i64: 1, 128, 128>}, {transform_indices = @transform_19, window_bounds = array<i64: 1, 1, 128>}, {transform_indices = @transform_20, window_bounds = array<i64: 8, 128>}]} {
    %c0 = arith.constant 0 : index
    %c0_0 = arith.constant 0 : index
    %0 = vector.load %arg4[%c0, %c0_0] : memref<128x128xbf16, #tpu.memory_space<vmem>>, vector<128x128xbf16>
    %c0_i32 = arith.constant 0 : i32
    %1 = arith.cmpi eq, %arg1, %c0_i32 : i32
    %2 = arith.extui %1 : i1 to i32
    %c0_i32_1 = arith.constant 0 : i32
    %3 = arith.cmpi ne, %2, %c0_i32_1 : i32
    scf.if %3 {
      %c0_95 = arith.constant 0 : index
      %c0_96 = arith.constant 0 : index
      %177 = vector.load %arg2[%c0_95, %c0_96] : memref<8x128xbf16, #tpu.memory_space<vmem>>, vector<8x128xbf16>
      %178 = arith.extf %177 : vector<8x128xbf16> to vector<8x128xf32>
      %c0_97 = arith.constant 0 : index
      %c0_98 = arith.constant 0 : index
      %179 = vector.load %arg23[%c0_97, %c0_98] : memref<8x128xf32, #tpu.memory_space<vmem>>, vector<8x128xf32>
      tpu.vector_store %arg23[%c0_97, %c0_98], %178 {strides = array<i32>} : memref<8x128xf32, #tpu.memory_space<vmem>>, vector<8x128xf32>,
    } else {
    }
    %c0_2 = arith.constant 0 : index
    %c0_3 = arith.constant 0 : index
    %4 = vector.load %arg23[%c0_2, %c0_3] : memref<8x128xf32, #tpu.memory_space<vmem>>, vector<8x128xf32>
    %c0_4 = arith.constant 0 : index
    %c0_5 = arith.constant 0 : index
    %5 = vector.load %arg3[%c0_4, %c0_5] : memref<8x128xbf16, #tpu.memory_space<vmem>>, vector<8x128xbf16>
    %6 = arith.truncf %4 : vector<8x128xf32> to vector<8x128xbf16>
    %c0_6 = arith.constant 0 : index
    %c0_7 = arith.constant 0 : index
    %c0_8 = arith.constant 0 : index
    %7 = vector.load %arg5[%c0_6, %c0_7, %c0_8] : memref<1x128x384xbf16, #tpu.memory_space<vmem>>, vector<1x128x384xbf16>
    %8 = vector.shape_cast %7 : vector<1x128x384xbf16> to vector<128x384xbf16>
    %cst = arith.constant dense<0.000000e+00> : vector<8x384xf32>
    %9 = tpu.matmul %6, %8, %cst {dimension_numbers = #tpu.dot_dimension_numbers<[1], [0], [0], [1], [0, 0, 1, 1], [], []>} : vector<8x128xbf16>, vector<128x384xbf16>, vector<8x384xf32> -> vector<8x384xf32>
    %10 = vector.extract_strided_slice %9 {offsets = [0, 0], sizes = [8, 128], strides = [1, 1]} : vector<8x384xf32> to vector<8x128xf32>
    %11 = vector.extract_strided_slice %9 {offsets = [0, 128], sizes = [8, 128], strides = [1, 1]} : vector<8x384xf32> to vector<8x128xf32>
    %12 = vector.extract_strided_slice %9 {offsets = [0, 256], sizes = [8, 128], strides = [1, 1]} : vector<8x384xf32> to vector<8x128xf32>
    %c0_9 = arith.constant 0 : index
    %c0_10 = arith.constant 0 : index
    %c0_11 = arith.constant 0 : index
    %13 = vector.load %arg6[%c0_9, %c0_10, %c0_11] : memref<1x128x128xbf16, #tpu.memory_space<vmem>>, vector<1x128x128xbf16>
    %14 = vector.shape_cast %13 : vector<1x128x128xbf16> to vector<128x128xbf16>
    %c0_12 = arith.constant 0 : index
    %c0_13 = arith.constant 0 : index
    %c0_14 = arith.constant 0 : index
    %15 = vector.load %arg7[%c0_12, %c0_13, %c0_14] : memref<1x1x128xf32, #tpu.memory_space<vmem>>, vector<1x1x128xf32>
    %16 = vector.shape_cast %15 : vector<1x1x128xf32> to vector<1x128xf32>
    %17 = arith.mulf %10, %11 : vector<8x128xf32>
    %cst_15 = arith.constant 0.176776692 : f32
    %18 = vector.broadcast %cst_15 : f32 to vector<8x128xf32>
    %19 = arith.mulf %17, %18 : vector<8x128xf32>
    %20 = arith.truncf %19 : vector<8x128xf32> to vector<8x128xbf16>
    %cst_16 = arith.constant dense<0.000000e+00> : vector<8x128xf32>
    %21 = tpu.matmul %20, %0, %cst_16 {dimension_numbers = #tpu.dot_dimension_numbers<[1], [0], [0], [1], [0, 0, 1, 1], [], []>} : vector<8x128xbf16>, vector<128x128xbf16>, vector<8x128xf32> -> vector<8x128xf32>
    %cst_17 = arith.constant 1.250000e-01 : f32
    %22 = vector.broadcast %cst_17 : f32 to vector<8x128xf32>
    %23 = arith.mulf %21, %22 : vector<8x128xf32>
    %24 = arith.subf %19, %23 : vector<8x128xf32>
    %25 = math.exp %24 : vector<8x128xf32>
    %26 = arith.truncf %25 : vector<8x128xf32> to vector<8x128xbf16>
    %cst_18 = arith.constant dense<0.000000e+00> : vector<8x128xf32>
    %27 = tpu.matmul %26, %0, %cst_18 {dimension_numbers = #tpu.dot_dimension_numbers<[1], [0], [0], [1], [0, 0, 1, 1], [], []>} : vector<8x128xbf16>, vector<128x128xbf16>, vector<8x128xf32> -> vector<8x128xf32>
    %cst_19 = arith.constant 9.99999997E-7 : f32
    %28 = vector.broadcast %cst_19 : f32 to vector<8x128xf32>
    %29 = arith.maximumf %27, %28 : vector<8x128xf32>
    %30 = arith.divf %25, %29 : vector<8x128xf32>
    %31 = arith.mulf %12, %30 : vector<8x128xf32>
    %32 = arith.truncf %31 : vector<8x128xf32> to vector<8x128xbf16>
    %cst_20 = arith.constant dense<0.000000e+00> : vector<8x128xf32>
    %33 = tpu.matmul %32, %14, %cst_20 {dimension_numbers = #tpu.dot_dimension_numbers<[1], [0], [0], [1], [0, 0, 1, 1], [], []>} : vector<8x128xbf16>, vector<128x128xbf16>, vector<8x128xf32> -> vector<8x128xf32>
    %34 = vector.broadcast %16 : vector<1x128xf32> to vector<8x128xf32>
    %35 = arith.addf %33, %34 : vector<8x128xf32>
    %c0_21 = arith.constant 0 : index
    %c0_22 = arith.constant 0 : index
    %c0_23 = arith.constant 0 : index
    %36 = vector.load %arg12[%c0_21, %c0_22, %c0_23] : memref<1x1x128xf32, #tpu.memory_space<vmem>>, vector<1x1x128xf32>
    %37 = vector.shape_cast %36 : vector<1x1x128xf32> to vector<1x128xf32>
    %c0_24 = arith.constant 0 : index
    %c0_25 = arith.constant 0 : index
    %c0_26 = arith.constant 0 : index
    %38 = vector.load %arg13[%c0_24, %c0_25, %c0_26] : memref<1x1x128xf32, #tpu.memory_space<vmem>>, vector<1x1x128xf32>
    %39 = vector.shape_cast %38 : vector<1x1x128xf32> to vector<1x128xf32>
    %40 = arith.addf %4, %35 : vector<8x128xf32>
    %cst_27 = arith.constant dense<0.000000e+00> : vector<8xf32>
    %41 = vector.multi_reduction <add>, %40, %cst_27 [1] : vector<8x128xf32> to vector<8xf32>
    %42 = vector.shape_cast %41 : vector<8xf32> to vector<8x1xf32>
    %cst_28 = arith.constant 3.125000e-02 : f32
    %43 = vector.broadcast %cst_28 : f32 to vector<8x1xf32>
    %44 = arith.mulf %42, %43 : vector<8x1xf32>
    %45 = vector.broadcast %44 : vector<8x1xf32> to vector<8x128xf32>
    %46 = arith.subf %40, %45 : vector<8x128xf32>
    %47 = arith.mulf %46, %46 : vector<8x128xf32>
    %cst_29 = arith.constant dense<0.000000e+00> : vector<8xf32>
    %48 = vector.multi_reduction <add>, %47, %cst_29 [1] : vector<8x128xf32> to vector<8xf32>
    %49 = vector.shape_cast %48 : vector<8xf32> to vector<8x1xf32>
    %50 = arith.mulf %44, %44 : vector<8x1xf32>
    %cst_30 = arith.constant 9.600000e+01 : f32
    %51 = vector.broadcast %cst_30 : f32 to vector<8x1xf32>
    %52 = arith.mulf %51, %50 : vector<8x1xf32>
    %53 = arith.subf %49, %52 : vector<8x1xf32>
    %cst_31 = arith.constant 3.125000e-02 : f32
    %54 = vector.broadcast %cst_31 : f32 to vector<8x1xf32>
    %55 = arith.mulf %53, %54 : vector<8x1xf32>
    %cst_32 = arith.constant 9.99999974E-6 : f32
    %56 = vector.broadcast %cst_32 : f32 to vector<8x1xf32>
    %57 = arith.addf %55, %56 : vector<8x1xf32>
    %58 = math.rsqrt %57 : vector<8x1xf32>
    %59 = vector.broadcast %58 : vector<8x1xf32> to vector<8x128xf32>
    %60 = arith.mulf %46, %59 : vector<8x128xf32>
    %61 = vector.broadcast %37 : vector<1x128xf32> to vector<8x128xf32>
    %62 = arith.mulf %60, %61 : vector<8x128xf32>
    %63 = vector.broadcast %39 : vector<1x128xf32> to vector<8x128xf32>
    %64 = arith.addf %62, %63 : vector<8x128xf32>
    %65 = arith.truncf %64 : vector<8x128xf32> to vector<8x128xbf16>
    %c0_33 = arith.constant 0 : index
    %c0_34 = arith.constant 0 : index
    %c0_35 = arith.constant 0 : index
    %66 = vector.load %arg8[%c0_33, %c0_34, %c0_35] : memref<1x128x128xbf16, #tpu.memory_space<vmem>>, vector<1x128x128xbf16>
    %67 = vector.shape_cast %66 : vector<1x128x128xbf16> to vector<128x128xbf16>
    %cst_36 = arith.constant dense<0.000000e+00> : vector<8x128xf32>
    %68 = tpu.matmul %65, %67, %cst_36 {dimension_numbers = #tpu.dot_dimension_numbers<[1], [0], [0], [1], [0, 0, 1, 1], [], []>} : vector<8x128xbf16>, vector<128x128xbf16>, vector<8x128xf32> -> vector<8x128xf32>
    %c0_37 = arith.constant 0 : index
    %c0_38 = arith.constant 0 : index
    %c0_39 = arith.constant 0 : index
    %69 = vector.load %arg9[%c0_37, %c0_38, %c0_39] : memref<1x128x256xbf16, #tpu.memory_space<vmem>>, vector<1x128x256xbf16>
    %70 = vector.shape_cast %69 : vector<1x128x256xbf16> to vector<128x256xbf16>
    %cst_40 = arith.constant dense<0.000000e+00> : vector<8x256xf32>
    %71 = tpu.matmul %5, %70, %cst_40 {dimension_numbers = #tpu.dot_dimension_numbers<[1], [0], [0], [1], [0, 0, 1, 1], [], []>} : vector<8x128xbf16>, vector<128x256xbf16>, vector<8x256xf32> -> vector<8x256xf32>
    %72 = vector.extract_strided_slice %71 {offsets = [0, 0], sizes = [8, 128], strides = [1, 1]} : vector<8x256xf32> to vector<8x128xf32>
    %73 = vector.extract_strided_slice %71 {offsets = [0, 128], sizes = [8, 128], strides = [1, 1]} : vector<8x256xf32> to vector<8x128xf32>
    %c0_41 = arith.constant 0 : index
    %c0_42 = arith.constant 0 : index
    %c0_43 = arith.constant 0 : index
    %74 = vector.load %arg10[%c0_41, %c0_42, %c0_43] : memref<1x128x128xbf16, #tpu.memory_space<vmem>>, vector<1x128x128xbf16>
    %75 = vector.shape_cast %74 : vector<1x128x128xbf16> to vector<128x128xbf16>
    %c0_44 = arith.constant 0 : index
    %c0_45 = arith.constant 0 : index
    %c0_46 = arith.constant 0 : index
    %76 = vector.load %arg11[%c0_44, %c0_45, %c0_46] : memref<1x1x128xf32, #tpu.memory_space<vmem>>, vector<1x1x128xf32>
    %77 = vector.shape_cast %76 : vector<1x1x128xf32> to vector<1x128xf32>
    %78 = arith.mulf %68, %72 : vector<8x128xf32>
    %cst_47 = arith.constant 0.176776692 : f32
    %79 = vector.broadcast %cst_47 : f32 to vector<8x128xf32>
    %80 = arith.mulf %78, %79 : vector<8x128xf32>
    %81 = arith.truncf %80 : vector<8x128xf32> to vector<8x128xbf16>
    %cst_48 = arith.constant dense<0.000000e+00> : vector<8x128xf32>
    %82 = tpu.matmul %81, %0, %cst_48 {dimension_numbers = #tpu.dot_dimension_numbers<[1], [0], [0], [1], [0, 0, 1, 1], [], []>} : vector<8x128xbf16>, vector<128x128xbf16>, vector<8x128xf32> -> vector<8x128xf32>
    %cst_49 = arith.constant 1.250000e-01 : f32
    %83 = vector.broadcast %cst_49 : f32 to vector<8x128xf32>
    %84 = arith.mulf %82, %83 : vector<8x128xf32>
    %85 = arith.subf %80, %84 : vector<8x128xf32>
    %86 = math.exp %85 : vector<8x128xf32>
    %87 = arith.truncf %86 : vector<8x128xf32> to vector<8x128xbf16>
    %cst_50 = arith.constant dense<0.000000e+00> : vector<8x128xf32>
    %88 = tpu.matmul %87, %0, %cst_50 {dimension_numbers = #tpu.dot_dimension_numbers<[1], [0], [0], [1], [0, 0, 1, 1], [], []>} : vector<8x128xbf16>, vector<128x128xbf16>, vector<8x128xf32> -> vector<8x128xf32>
    %cst_51 = arith.constant 9.99999997E-7 : f32
    %89 = vector.broadcast %cst_51 : f32 to vector<8x128xf32>
    %90 = arith.maximumf %88, %89 : vector<8x128xf32>
    %91 = arith.divf %86, %90 : vector<8x128xf32>
    %92 = arith.mulf %73, %91 : vector<8x128xf32>
    %93 = arith.truncf %92 : vector<8x128xf32> to vector<8x128xbf16>
    %cst_52 = arith.constant dense<0.000000e+00> : vector<8x128xf32>
    %94 = tpu.matmul %93, %75, %cst_52 {dimension_numbers = #tpu.dot_dimension_numbers<[1], [0], [0], [1], [0, 0, 1, 1], [], []>} : vector<8x128xbf16>, vector<128x128xbf16>, vector<8x128xf32> -> vector<8x128xf32>
    %95 = vector.broadcast %77 : vector<1x128xf32> to vector<8x128xf32>
    %96 = arith.addf %94, %95 : vector<8x128xf32>
    %c0_53 = arith.constant 0 : index
    %c0_54 = arith.constant 0 : index
    %c0_55 = arith.constant 0 : index
    %97 = vector.load %arg14[%c0_53, %c0_54, %c0_55] : memref<1x1x128xf32, #tpu.memory_space<vmem>>, vector<1x1x128xf32>
    %98 = vector.shape_cast %97 : vector<1x1x128xf32> to vector<1x128xf32>
    %c0_56 = arith.constant 0 : index
    %c0_57 = arith.constant 0 : index
    %c0_58 = arith.constant 0 : index
    %99 = vector.load %arg15[%c0_56, %c0_57, %c0_58] : memref<1x1x128xf32, #tpu.memory_space<vmem>>, vector<1x1x128xf32>
    %100 = vector.shape_cast %99 : vector<1x1x128xf32> to vector<1x128xf32>
    %101 = arith.addf %64, %96 : vector<8x128xf32>
    %cst_59 = arith.constant dense<0.000000e+00> : vector<8xf32>
    %102 = vector.multi_reduction <add>, %101, %cst_59 [1] : vector<8x128xf32> to vector<8xf32>
    %103 = vector.shape_cast %102 : vector<8xf32> to vector<8x1xf32>
    %cst_60 = arith.constant 3.125000e-02 : f32
    %104 = vector.broadcast %cst_60 : f32 to vector<8x1xf32>
    %105 = arith.mulf %103, %104 : vector<8x1xf32>
    %106 = vector.broadcast %105 : vector<8x1xf32> to vector<8x128xf32>
    %107 = arith.subf %101, %106 : vector<8x128xf32>
    %108 = arith.mulf %107, %107 : vector<8x128xf32>
    %cst_61 = arith.constant dense<0.000000e+00> : vector<8xf32>
    %109 = vector.multi_reduction <add>, %108, %cst_61 [1] : vector<8x128xf32> to vector<8xf32>
    %110 = vector.shape_cast %109 : vector<8xf32> to vector<8x1xf32>
    %111 = arith.mulf %105, %105 : vector<8x1xf32>
    %cst_62 = arith.constant 9.600000e+01 : f32
    %112 = vector.broadcast %cst_62 : f32 to vector<8x1xf32>
    %113 = arith.mulf %112, %111 : vector<8x1xf32>
    %114 = arith.subf %110, %113 : vector<8x1xf32>
    %cst_63 = arith.constant 3.125000e-02 : f32
    %115 = vector.broadcast %cst_63 : f32 to vector<8x1xf32>
    %116 = arith.mulf %114, %115 : vector<8x1xf32>
    %cst_64 = arith.constant 9.99999974E-6 : f32
    %117 = vector.broadcast %cst_64 : f32 to vector<8x1xf32>
    %118 = arith.addf %116, %117 : vector<8x1xf32>
    %119 = math.rsqrt %118 : vector<8x1xf32>
    %120 = vector.broadcast %119 : vector<8x1xf32> to vector<8x128xf32>
    %121 = arith.mulf %107, %120 : vector<8x128xf32>
    %122 = vector.broadcast %98 : vector<1x128xf32> to vector<8x128xf32>
    %123 = arith.mulf %121, %122 : vector<8x128xf32>
    %124 = vector.broadcast %100 : vector<1x128xf32> to vector<8x128xf32>
    %125 = arith.addf %123, %124 : vector<8x128xf32>
    %126 = arith.truncf %125 : vector<8x128xf32> to vector<8x128xbf16>
    %c0_65 = arith.constant 0 : index
    %c0_66 = arith.constant 0 : index
    %c0_67 = arith.constant 0 : index
    %127 = vector.load %arg18[%c0_65, %c0_66, %c0_67] : memref<1x128x128xbf16, #tpu.memory_space<vmem>>, vector<1x128x128xbf16>
    %128 = vector.shape_cast %127 : vector<1x128x128xbf16> to vector<128x128xbf16>
    %cst_68 = arith.constant dense<0.000000e+00> : vector<8x128xf32>
    %129 = tpu.matmul %126, %128, %cst_68 {dimension_numbers = #tpu.dot_dimension_numbers<[1], [0], [0], [1], [0, 0, 1, 1], [], []>} : vector<8x128xbf16>, vector<128x128xbf16>, vector<8x128xf32> -> vector<8x128xf32>
    %c0_69 = arith.constant 0 : index
    %c0_70 = arith.constant 0 : index
    %c0_71 = arith.constant 0 : index
    %130 = vector.load %arg19[%c0_69, %c0_70, %c0_71] : memref<1x1x128xf32, #tpu.memory_space<vmem>>, vector<1x1x128xf32>
    %131 = vector.shape_cast %130 : vector<1x1x128xf32> to vector<1x128xf32>
    %132 = vector.broadcast %131 : vector<1x128xf32> to vector<8x128xf32>
    %133 = arith.addf %129, %132 : vector<8x128xf32>
    %cst_72 = arith.constant 0.000000e+00 : f32
    %134 = vector.broadcast %cst_72 : f32 to vector<8x128xf32>
    %135 = arith.maximumf %133, %134 : vector<8x128xf32>
    %136 = arith.truncf %135 : vector<8x128xf32> to vector<8x128xbf16>
    %c0_73 = arith.constant 0 : index
    %c0_74 = arith.constant 0 : index
    %c0_75 = arith.constant 0 : index
    %137 = vector.load %arg20[%c0_73, %c0_74, %c0_75] : memref<1x128x128xbf16, #tpu.memory_space<vmem>>, vector<1x128x128xbf16>
    %138 = vector.shape_cast %137 : vector<1x128x128xbf16> to vector<128x128xbf16>
    %cst_76 = arith.constant dense<0.000000e+00> : vector<8x128xf32>
    %139 = tpu.matmul %136, %138, %cst_76 {dimension_numbers = #tpu.dot_dimension_numbers<[1], [0], [0], [1], [0, 0, 1, 1], [], []>} : vector<8x128xbf16>, vector<128x128xbf16>, vector<8x128xf32> -> vector<8x128xf32>
    %c0_77 = arith.constant 0 : index
    %c0_78 = arith.constant 0 : index
    %c0_79 = arith.constant 0 : index
    %140 = vector.load %arg21[%c0_77, %c0_78, %c0_79] : memref<1x1x128xf32, #tpu.memory_space<vmem>>, vector<1x1x128xf32>
    %141 = vector.shape_cast %140 : vector<1x1x128xf32> to vector<1x128xf32>
    %142 = vector.broadcast %141 : vector<1x128xf32> to vector<8x128xf32>
    %143 = arith.addf %139, %142 : vector<8x128xf32>
    %c0_80 = arith.constant 0 : index
    %c0_81 = arith.constant 0 : index
    %c0_82 = arith.constant 0 : index
    %144 = vector.load %arg16[%c0_80, %c0_81, %c0_82] : memref<1x1x128xf32, #tpu.memory_space<vmem>>, vector<1x1x128xf32>
    %145 = vector.shape_cast %144 : vector<1x1x128xf32> to vector<1x128xf32>
    %c0_83 = arith.constant 0 : index
    %c0_84 = arith.constant 0 : index
    %c0_85 = arith.constant 0 : index
    %146 = vector.load %arg17[%c0_83, %c0_84, %c0_85] : memref<1x1x128xf32, #tpu.memory_space<vmem>>, vector<1x1x128xf32>
    %147 = vector.shape_cast %146 : vector<1x1x128xf32> to vector<1x128xf32>
    %148 = arith.addf %125, %143 : vector<8x128xf32>
    %cst_86 = arith.constant dense<0.000000e+00> : vector<8xf32>
    %149 = vector.multi_reduction <add>, %148, %cst_86 [1] : vector<8x128xf32> to vector<8xf32>
    %150 = vector.shape_cast %149 : vector<8xf32> to vector<8x1xf32>
    %cst_87 = arith.constant 3.125000e-02 : f32
    %151 = vector.broadcast %cst_87 : f32 to vector<8x1xf32>
    %152 = arith.mulf %150, %151 : vector<8x1xf32>
    %153 = vector.broadcast %152 : vector<8x1xf32> to vector<8x128xf32>
    %154 = arith.subf %148, %153 : vector<8x128xf32>
    %155 = arith.mulf %154, %154 : vector<8x128xf32>
    %cst_88 = arith.constant dense<0.000000e+00> : vector<8xf32>
    %156 = vector.multi_reduction <add>, %155, %cst_88 [1] : vector<8x128xf32> to vector<8xf32>
    %157 = vector.shape_cast %156 : vector<8xf32> to vector<8x1xf32>
    %158 = arith.mulf %152, %152 : vector<8x1xf32>
    %cst_89 = arith.constant 9.600000e+01 : f32
    %159 = vector.broadcast %cst_89 : f32 to vector<8x1xf32>
    %160 = arith.mulf %159, %158 : vector<8x1xf32>
    %161 = arith.subf %157, %160 : vector<8x1xf32>
    %cst_90 = arith.constant 3.125000e-02 : f32
    %162 = vector.broadcast %cst_90 : f32 to vector<8x1xf32>
    %163 = arith.mulf %161, %162 : vector<8x1xf32>
    %cst_91 = arith.constant 9.99999974E-6 : f32
    %164 = vector.broadcast %cst_91 : f32 to vector<8x1xf32>
    %165 = arith.addf %163, %164 : vector<8x1xf32>
    %166 = math.rsqrt %165 : vector<8x1xf32>
    %167 = vector.broadcast %166 : vector<8x1xf32> to vector<8x128xf32>
    %168 = arith.mulf %154, %167 : vector<8x128xf32>
    %169 = vector.broadcast %145 : vector<1x128xf32> to vector<8x128xf32>
    %170 = arith.mulf %168, %169 : vector<8x128xf32>
    %171 = vector.broadcast %147 : vector<1x128xf32> to vector<8x128xf32>
    %172 = arith.addf %170, %171 : vector<8x128xf32>
    %c0_92 = arith.constant 0 : index
    %c0_93 = arith.constant 0 : index
    %173 = vector.load %arg23[%c0_92, %c0_93] : memref<8x128xf32, #tpu.memory_space<vmem>>, vector<8x128xf32>
    tpu.vector_store %arg23[%c0_92, %c0_93], %172 {strides = array<i32>} : memref<8x128xf32, #tpu.memory_space<vmem>>, vector<8x128xf32>,
    %c1_i32 = arith.constant 1 : i32
    %174 = arith.cmpi eq, %arg1, %c1_i32 : i32
    %175 = arith.extui %174 : i1 to i32
    %c0_i32_94 = arith.constant 0 : i32
    %176 = arith.cmpi ne, %175, %c0_i32_94 : i32
    scf.if %176 {
      %177 = arith.truncf %172 : vector<8x128xf32> to vector<8x128xbf16>
      %c0_95 = arith.constant 0 : index
      %c0_96 = arith.constant 0 : index
      %178 = vector.load %arg22[%c0_95, %c0_96] : memref<8x128xbf16, #tpu.memory_space<vmem>>, vector<8x128xbf16>
      tpu.vector_store %arg22[%c0_95, %c0_96], %177 {strides = array<i32>} : memref<8x128xbf16, #tpu.memory_space<vmem>>, vector<8x128xbf16>,
    } else {
    }
    return
  }
  func.func @transform_0(%arg0: i32, %arg1: i32) -> (i32, i32) {
    %c0_i32 = arith.constant 0 : i32
    %c0_i32_0 = arith.constant 0 : i32
    return %arg0, %c0_i32 : i32, i32
  }
  func.func @transform_1(%arg0: i32, %arg1: i32) -> (i32, i32) {
    %c0_i32 = arith.constant 0 : i32
    %c0_i32_0 = arith.constant 0 : i32
    return %arg0, %c0_i32 : i32, i32
  }
  func.func @transform_2(%arg0: i32, %arg1: i32) -> (i32, i32) {
    %c0_i32 = arith.constant 0 : i32
    %c0_i32_0 = arith.constant 0 : i32
    %c0_i32_1 = arith.constant 0 : i32
    return %c0_i32, %c0_i32_0 : i32, i32
  }
  func.func @transform_3(%arg0: i32, %arg1: i32) -> (i32, i32, i32) {
    %c0_i32 = arith.constant 0 : i32
    %c0_i32_0 = arith.constant 0 : i32
    %c0_i32_1 = arith.constant 0 : i32
    return %arg1, %c0_i32, %c0_i32_0 : i32, i32, i32
  }
  func.func @transform_4(%arg0: i32, %arg1: i32) -> (i32, i32, i32) {
    %c0_i32 = arith.constant 0 : i32
    %c0_i32_0 = arith.constant 0 : i32
    %c0_i32_1 = arith.constant 0 : i32
    return %arg1, %c0_i32, %c0_i32_0 : i32, i32, i32
  }
  func.func @transform_5(%arg0: i32, %arg1: i32) -> (i32, i32, i32) {
    %c0_i32 = arith.constant 0 : i32
    %c0_i32_0 = arith.constant 0 : i32
    %c0_i32_1 = arith.constant 0 : i32
    return %arg1, %c0_i32, %c0_i32_0 : i32, i32, i32
  }
  func.func @transform_6(%arg0: i32, %arg1: i32) -> (i32, i32, i32) {
    %c0_i32 = arith.constant 0 : i32
    %c0_i32_0 = arith.constant 0 : i32
    %c0_i32_1 = arith.constant 0 : i32
    return %arg1, %c0_i32, %c0_i32_0 : i32, i32, i32
  }
  func.func @transform_7(%arg0: i32, %arg1: i32) -> (i32, i32, i32) {
    %c0_i32 = arith.constant 0 : i32
    %c0_i32_0 = arith.constant 0 : i32
    %c0_i32_1 = arith.constant 0 : i32
    return %arg1, %c0_i32, %c0_i32_0 : i32, i32, i32
  }
  func.func @transform_8(%arg0: i32, %arg1: i32) -> (i32, i32, i32) {
    %c0_i32 = arith.constant 0 : i32
    %c0_i32_0 = arith.constant 0 : i32
    %c0_i32_1 = arith.constant 0 : i32
    return %arg1, %c0_i32, %c0_i32_0 : i32, i32, i32
  }
  func.func @transform_9(%arg0: i32, %arg1: i32) -> (i32, i32, i32) {
    %c0_i32 = arith.constant 0 : i32
    %c0_i32_0 = arith.constant 0 : i32
    %c0_i32_1 = arith.constant 0 : i32
    return %arg1, %c0_i32, %c0_i32_0 : i32, i32, i32
  }
  func.func @transform_10(%arg0: i32, %arg1: i32) -> (i32, i32, i32) {
    %c0_i32 = arith.constant 0 : i32
    %c0_i32_0 = arith.constant 0 : i32
    %c0_i32_1 = arith.constant 0 : i32
    return %arg1, %c0_i32, %c0_i32_0 : i32, i32, i32
  }
  func.func @transform_11(%arg0: i32, %arg1: i32) -> (i32, i32, i32) {
    %c0_i32 = arith.constant 0 : i32
    %c0_i32_0 = arith.constant 0 : i32
    %c0_i32_1 = arith.constant 0 : i32
    return %arg1, %c0_i32, %c0_i32_0 : i32, i32, i32
  }
  func.func @transform_12(%arg0: i32, %arg1: i32) -> (i32, i32, i32) {
    %c0_i32 = arith.constant 0 : i32
    %c0_i32_0 = arith.constant 0 : i32
    %c0_i32_1 = arith.constant 0 : i32
    return %arg1, %c0_i32, %c0_i32_0 : i32, i32, i32
  }
  func.func @transform_13(%arg0: i32, %arg1: i32) -> (i32, i32, i32) {
    %c0_i32 = arith.constant 0 : i32
    %c0_i32_0 = arith.constant 0 : i32
    %c0_i32_1 = arith.constant 0 : i32
    return %arg1, %c0_i32, %c0_i32_0 : i32, i32, i32
  }
  func.func @transform_14(%arg0: i32, %arg1: i32) -> (i32, i32, i32) {
    %c0_i32 = arith.constant 0 : i32
    %c0_i32_0 = arith.constant 0 : i32
    %c0_i32_1 = arith.constant 0 : i32
    return %arg1, %c0_i32, %c0_i32_0 : i32, i32, i32
  }
  func.func @transform_15(%arg0: i32, %arg1: i32) -> (i32, i32, i32) {
    %c0_i32 = arith.constant 0 : i32
    %c0_i32_0 = arith.constant 0 : i32
    %c0_i32_1 = arith.constant 0 : i32
    return %arg1, %c0_i32, %c0_i32_0 : i32, i32, i32
  }
  func.func @transform_16(%arg0: i32, %arg1: i32) -> (i32, i32, i32) {
    %c0_i32 = arith.constant 0 : i32
    %c0_i32_0 = arith.constant 0 : i32
    %c0_i32_1 = arith.constant 0 : i32
    return %arg1, %c0_i32, %c0_i32_0 : i32, i32, i32
  }
  func.func @transform_17(%arg0: i32, %arg1: i32) -> (i32, i32, i32) {
    %c0_i32 = arith.constant 0 : i32
    %c0_i32_0 = arith.constant 0 : i32
    %c0_i32_1 = arith.constant 0 : i32
    return %arg1, %c0_i32, %c0_i32_0 : i32, i32, i32
  }
  func.func @transform_18(%arg0: i32, %arg1: i32) -> (i32, i32, i32) {
    %c0_i32 = arith.constant 0 : i32
    %c0_i32_0 = arith.constant 0 : i32
    %c0_i32_1 = arith.constant 0 : i32
    return %arg1, %c0_i32, %c0_i32_0 : i32, i32, i32
  }
  func.func @transform_19(%arg0: i32, %arg1: i32) -> (i32, i32, i32) {
    %c0_i32 = arith.constant 0 : i32
    %c0_i32_0 = arith.constant 0 : i32
    %c0_i32_1 = arith.constant 0 : i32
    return %arg1, %c0_i32, %c0_i32_0 : i32, i32, i32
  }
  func.func @transform_20(%arg0: i32, %arg1: i32) -> (i32, i32) {
    %c0_i32 = arith.constant 0 : i32
    %c0_i32_0 = arith.constant 0 : i32
    return %arg0, %c0_i32 : i32, i32
  }
}

</mosaic_0001>

<llo_original>
// kernel: tpu_custom_call.1
$region0: #{tpu_custom_call.1}
  #allocation0 [shape = 'u32[]', space=smem, size = 0x4, offset = 0x4, fixed_abs, tag = 'smem constant byte address 0x4 - core index']
  #allocation1 [shape = 'u32[144,128]{1,0:T(1,128)}', space=vmem, size = 0x12000, scoped, tag = 'internal scratch']
  #allocation2 [shape = 'f32[8,128]{1,0:T(8,128)}', space=vmem, size = 0x1000, scoped, tag = 'scratch operand']
  %s0 = inlined_call_operand.hbm [shape: bf16[16,128], index: 0, kind: input, shape index: {}]
  %s1 = inlined_call_operand.hbm [shape: bf16[16,128], index: 1, kind: input, shape index: {}]
  %s2 = inlined_call_operand.hbm [shape: bf16[128,128], index: 2, kind: input, shape index: {}]
  %s3 = inlined_call_operand.hbm [shape: bf16[2,128,384], index: 3, kind: input, shape index: {}]
  %s4 = inlined_call_operand.hbm [shape: bf16[2,128,128], index: 4, kind: input, shape index: {}]
  %s5 = inlined_call_operand.vmem [shape: f32[2,1,128], index: 5, kind: input, shape index: {}]
  %s6 = inlined_call_operand.hbm [shape: bf16[2,128,128], index: 6, kind: input, shape index: {}]
  %s7 = inlined_call_operand.hbm [shape: bf16[2,128,256], index: 7, kind: input, shape index: {}]
  %s8 = inlined_call_operand.hbm [shape: bf16[2,128,128], index: 8, kind: input, shape index: {}]
  %s9 = inlined_call_operand.vmem [shape: f32[2,1,128], index: 9, kind: input, shape index: {}]
  %s10 = inlined_call_operand.vmem [shape: f32[2,1,128], index: 10, kind: input, shape index: {}]
  %s11 = inlined_call_operand.vmem [shape: f32[2,1,128], index: 11, kind: input, shape index: {}]
  %s12 = inlined_call_operand.vmem [shape: f32[2,1,128], index: 12, kind: input, shape index: {}]
  %s13 = inlined_call_operand.vmem [shape: f32[2,1,128], index: 13, kind: input, shape index: {}]
  %s14 = inlined_call_operand.vmem [shape: f32[2,1,128], index: 14, kind: input, shape index: {}]
  %s15 = inlined_call_operand.vmem [shape: f32[2,1,128], index: 15, kind: input, shape index: {}]
  %s16 = inlined_call_operand.hbm [shape: bf16[2,128,128], index: 16, kind: input, shape index: {}]
  %s17 = inlined_call_operand.vmem [shape: f32[2,1,128], index: 17, kind: input, shape index: {}]
  %s18 = inlined_call_operand.hbm [shape: bf16[2,128,128], index: 18, kind: input, shape index: {}]
  %s19 = inlined_call_operand.vmem [shape: f32[2,1,128], index: 19, kind: input, shape index: {}]
  %s20 = inlined_call_operand.hbm [shape: bf16[16,128], index: 20, kind: output, shape index: {}]
  %s21 = sld [smem:[#allocation0]]
  $region161: #{tpu_custom_call.1} parent=0
    _
  %s23 = ssub.s32 1, %s21
  %s24 = scalar_select 0, %s23, %s21
  $region1: #{tpu_custom_call.1} parent=0
    #allocation3 [shape = 'u8[4096]{0}', space=vmem, size = 0x1000, scoped, tag = 'input window, operand 0']
    #allocation4 [shape = 's32[2]{0}', space=sflag, size = 0x8, scoped, tag = 'scoped memory for tpu_custom_call.1']
    #allocation5 [shape = 's32[2]{0}', space=sflag, size = 0x8, scoped, tag = 'scoped memory for tpu_custom_call.1']
    #allocation6 [shape = 'u8[4096]{0}', space=vmem, size = 0x1000, scoped, tag = 'input window, operand 1']
    #allocation7 [shape = 's32[2]{0}', space=sflag, size = 0x8, scoped, tag = 'scoped memory for tpu_custom_call.1']
    #allocation8 [shape = 'u8[32768]{0}', space=vmem, size = 0x8000, scoped, tag = 'input window, operand 2, single buffered']
    #allocation9 [shape = 'u8[196608]{0}', space=vmem, size = 0x30000, scoped, tag = 'input window, operand 3']
    #allocation10 [shape = 's32[2]{0}', space=sflag, size = 0x8, scoped, tag = 'scoped memory for tpu_custom_call.1']
    #allocation11 [shape = 'u8[65536]{0}', space=vmem, size = 0x10000, scoped, tag = 'input window, operand 4']
    #allocation12 [shape = 'u8[65536]{0}', space=vmem, size = 0x10000, scoped, tag = 'input window, operand 6']
    #allocation13 [shape = 's32[2]{0}', space=sflag, size = 0x8, scoped, tag = 'scoped memory for tpu_custom_call.1']
    #allocation14 [shape = 'u8[131072]{0}', space=vmem, size = 0x20000, scoped, tag = 'input window, operand 7']
    #allocation15 [shape = 'u8[65536]{0}', space=vmem, size = 0x10000, scoped, tag = 'input window, operand 8']
    #allocation16 [shape = 's32[2]{0}', space=sflag, size = 0x8, scoped, tag = 'scoped memory for tpu_custom_call.1']
    #allocation17 [shape = 'u8[65536]{0}', space=vmem, size = 0x10000, scoped, tag = 'input window, operand 16']
    #allocation18 [shape = 'u8[65536]{0}', space=vmem, size = 0x10000, scoped, tag = 'input window, operand 18']
    #allocation19 [shape = 's32[2]{0}', space=sflag, size = 0x8, scoped, tag = 'scoped memory for tpu_custom_call.1']
    #allocation20 [shape = 'u8[4096]{0}', space=vmem, size = 0x1000, scoped, tag = 'output window, operand 0']
    %25 = vsyncpa [#allocation4], 0
    %s26 = scalar_lea.sflag [#allocation4], 1
    %27 = vsyncpa %s26, 0
    %28 = vsyncpa [#allocation7], 0
    %s29 = scalar_lea.sflag [#allocation7], 1
    %30 = vsyncpa %s29, 0
    %31 = vsyncpa [#allocation10], 0
    %s32 = scalar_lea.sflag [#allocation10], 1
    %33 = vsyncpa %s32, 0
    %34 = vsyncpa [#allocation13], 0
    %s35 = scalar_lea.sflag [#allocation13], 1
    %36 = vsyncpa %s35, 0
    %37 = vsyncpa [#allocation16], 0
    %s38 = scalar_lea.sflag [#allocation16], 1
    %39 = vsyncpa %s38, 0
    %40 = vsyncpa [#allocation19], 0
    %s41 = scalar_lea.sflag [#allocation19], 1
    %42 = vsyncpa %s41, 0
    %43 = vsyncpa [#allocation5], 0
    %s44 = scalar_lea.sflag [#allocation5], 1
    %45 = vsyncpa %s44, 0
    loop: start=0, step=1, limit=6
    $region2: #{tpu_custom_call.1} parent=1 // loop_pre_header
      _
    $region3: #{tpu_custom_call.1} parent=1 // loop_header
      %s47 = sphi 0, %s51
      %p48 = scmp.ge.s32.totalorder %s47, 6
      %s54 = sphi 0, %s66
      %s55 = sphi 0, %s62
      %s56 = sphi 0, %s54
      %s57 = sphi 0, %s55
      %s58 = sphi 0, %s56
      %s59 = sphi 0, %s57
      %s69 = sphi 0, %s71
      %s72 = sphi 0, %s69
      %s73 = sphi 0, %s72
      %s89 = sphi 0, %s73
      %s95 = sphi 0, %s97
      %s98 = sphi 0, %s95
      %s99 = sphi 0, %s98
      %s115 = sphi 0, %s99
      %s119 = sphi 0, %s119
      %s121 = sphi 0, %s119
      %s122 = sphi 0, %s121
      %s136 = sphi 0, %s122
      %s142 = sphi 0, %s144
      %s145 = sphi 0, %s142
      %s146 = sphi 0, %s145
      %s162 = sphi 0, %s146
      %s168 = sphi 0, %s170
      %s171 = sphi 0, %s168
      %s172 = sphi 0, %s171
      %s188 = sphi 0, %s172
      %s194 = sphi 0, %s196
      %s197 = sphi 0, %s194
      %s198 = sphi 0, %s197
      %s214 = sphi 0, %s198
      %s220 = sphi 0, %s222
      %s223 = sphi 0, %s220
      %s224 = sphi 0, %s223
      %s240 = sphi 0, %s224
      %s246 = sphi 0, %s248
      %s249 = sphi 0, %s246
      %s250 = sphi 0, %s249
      %s266 = sphi 0, %s250
      %s272 = sphi 0, %s274
      %s275 = sphi 0, %s272
      %s276 = sphi 0, %s275
      %s292 = sphi 0, %s276
      %s298 = sphi 0, %s300
      %s301 = sphi 0, %s298
      %s302 = sphi 0, %s301
      %s318 = sphi 0, %s302
      %s324 = sphi 0, %s326
      %s327 = sphi 0, %s324
      %s328 = sphi 0, %s327
      %s344 = sphi 0, %s328
      %s350 = sphi 0, %s352
      %s353 = sphi 0, %s350
      %s354 = sphi 0, %s353
      %s370 = sphi 0, %s354
      %s376 = sphi 0, %s378
      %s379 = sphi 0, %s376
      %s380 = sphi 0, %s379
      %s396 = sphi 0, %s380
      %s402 = sphi 0, %s404
      %s405 = sphi 0, %s402
      %s406 = sphi 0, %s405
      %s422 = sphi 0, %s406
      %s428 = sphi 0, %s430
      %s431 = sphi 0, %s428
      %s432 = sphi 0, %s431
      %s448 = sphi 0, %s432
      %s454 = sphi 0, %s456
      %s457 = sphi 0, %s454
      %s458 = sphi 0, %s457
      %s474 = sphi 0, %s458
      %s480 = sphi 0, %s482
      %s483 = sphi 0, %s480
      %s484 = sphi 0, %s483
      %s500 = sphi 0, %s484
      %s506 = sphi 0, %s508
      %s509 = sphi 0, %s506
      %s510 = sphi 0, %s509
      %s526 = sphi 0, %s510
      %s532 = sphi 0, %s534
      %s535 = sphi 0, %s532
      %s536 = sphi 0, %s535
      %s552 = sphi 0, %s536
      %s558 = sphi 0, %s560
      %s561 = sphi 0, %s558
      %s562 = sphi 0, %s561
      %s578 = sphi 0, %s562
      %s584 = sphi 0, %s586
      %s587 = sphi 0, %s584
      %s588 = sphi 0, %s587
      %s604 = sphi 0, %s588
    $region4: #{tpu_custom_call.1} parent=1 // loop_header_branch
      %50 = sbr.rel (%p48) target = $region8
    $region5: #{tpu_custom_call.1} parent=1 // loop_body
      %s52 = ssub.s32 %s47, 1
      %s53 = ssub.s32 %s47, 2
      %s60 = sadd.s32 1, %s55
      %p61 = scmp.ge.s32.totalorder %s60, 2
      %s62 = scalar_select %p61, 0, %s60
      %s63 = sadd.s32 1, %s54
      %s64 = scalar_select %p61, %s63, %s54
      %p65 = scmp.ge.s32.totalorder %s64, 2
      %s66 = scalar_select %p65, 0, %s64
      %s67 = ssub.s32 %s54, %s66
      %p68 = scmp.eq.s32.totalorder %s67, 0
      %s70 = sadd.s32 %s69, 1
      %s71 = scalar_select %p68, %s69, %s70
      %p74 = pneg %p68
      %p75 = scmp.eq.s32.totalorder %s47, 3
      %p76 = por %p74, %p75
      %p77 = scmp.ne.s32.totalorder %s69, %s72
      %p78 = scmp.eq.s32.totalorder %s47, 0
      %p79 = por %p77, %p78
      %p80 = scmp.ne.s32.totalorder %s69, %s72
      %p81 = scmp.eq.s32.totalorder %s52, 3
      %p82 = por %p80, %p81
      %p83 = scmp.ne.s32.totalorder %s72, %s73
      %p84 = scmp.eq.s32.totalorder %s52, 0
      %p85 = por %p83, %p84
      %p86 = scmp.ne.s32.totalorder %s72, %s73
      %p87 = scmp.eq.s32.totalorder %s53, 3
      %p88 = por %p86, %p87
      %p90 = scmp.ne.s32.totalorder %s73, %s89
      %p91 = scmp.eq.s32.totalorder %s53, 0
      %p92 = por %p90, %p91
      %s93 = ssub.s32 %s54, %s66
      %p94 = scmp.eq.s32.totalorder %s93, 0
      %s96 = sadd.s32 %s95, 1
      %s97 = scalar_select %p94, %s95, %s96
      %p100 = pneg %p94
      %p101 = scmp.eq.s32.totalorder %s47, 3
      %p102 = por %p100, %p101
      %p103 = scmp.ne.s32.totalorder %s95, %s98
      %p104 = scmp.eq.s32.totalorder %s47, 0
      %p105 = por %p103, %p104
      %p106 = scmp.ne.s32.totalorder %s95, %s98
      %p107 = scmp.eq.s32.totalorder %s52, 3
      %p108 = por %p106, %p107
      %p109 = scmp.ne.s32.totalorder %s98, %s99
      %p110 = scmp.eq.s32.totalorder %s52, 0
      %p111 = por %p109, %p110
      %p112 = scmp.ne.s32.totalorder %s98, %s99
      %p113 = scmp.eq.s32.totalorder %s53, 3
      %p114 = por %p112, %p113
      %p116 = scmp.ne.s32.totalorder %s99, %s115
      %p117 = scmp.eq.s32.totalorder %s53, 0
      %p118 = por %p116, %p117
      %s120 = sadd.s32 %s119, 1
      %p123 = scmp.eq.s32.totalorder %s47, 3
      %p124 = scmp.ne.s32.totalorder %s119, %s121
      %p125 = scmp.eq.s32.totalorder %s47, 0
      %p126 = por %p124, %p125
      %p127 = scmp.ne.s32.totalorder %s119, %s121
      %p128 = scmp.eq.s32.totalorder %s52, 3
      %p129 = por %p127, %p128
      %p130 = scmp.ne.s32.totalorder %s121, %s122
      %p131 = scmp.eq.s32.totalorder %s52, 0
      %p132 = por %p130, %p131
      %p133 = scmp.ne.s32.totalorder %s121, %s122
      %p134 = scmp.eq.s32.totalorder %s53, 3
      %p135 = por %p133, %p134
      %p137 = scmp.ne.s32.totalorder %s122, %s136
      %p138 = scmp.eq.s32.totalorder %s53, 0
      %p139 = por %p137, %p138
      %s140 = ssub.s32 %s55, %s62
      %p141 = scmp.eq.s32.totalorder %s140, 0
      %s143 = sadd.s32 %s142, 1
      %s144 = scalar_select %p141, %s142, %s143
      %p147 = pneg %p141
      %p148 = scmp.eq.s32.totalorder %s47, 3
      %p149 = por %p147, %p148
      %p150 = scmp.ne.s32.totalorder %s142, %s145
      %p151 = scmp.eq.s32.totalorder %s47, 0
      %p152 = por %p150, %p151
      %p153 = scmp.ne.s32.totalorder %s142, %s145
      %p154 = scmp.eq.s32.totalorder %s52, 3
      %p155 = por %p153, %p154
      %p156 = scmp.ne.s32.totalorder %s145, %s146
      %p157 = scmp.eq.s32.totalorder %s52, 0
      %p158 = por %p156, %p157
      %p159 = scmp.ne.s32.totalorder %s145, %s146
      %p160 = scmp.eq.s32.totalorder %s53, 3
      %p161 = por %p159, %p160
      %p163 = scmp.ne.s32.totalorder %s146, %s162
      %p164 = scmp.eq.s32.totalorder %s53, 0
      %p165 = por %p163, %p164
      %s166 = ssub.s32 %s55, %s62
      %p167 = scmp.eq.s32.totalorder %s166, 0
      %s169 = sadd.s32 %s168, 1
      %s170 = scalar_select %p167, %s168, %s169
      %p173 = pneg %p167
      %p174 = scmp.eq.s32.totalorder %s47, 3
      %p175 = por %p173, %p174
      %p176 = scmp.ne.s32.totalorder %s168, %s171
      %p177 = scmp.eq.s32.totalorder %s47, 0
      %p178 = por %p176, %p177
      %p179 = scmp.ne.s32.totalorder %s168, %s171
      %p180 = scmp.eq.s32.totalorder %s52, 3
      %p181 = por %p179, %p180
      %p182 = scmp.ne.s32.totalorder %s171, %s172
      %p183 = scmp.eq.s32.totalorder %s52, 0
      %p184 = por %p182, %p183
      %p185 = scmp.ne.s32.totalorder %s171, %s172
      %p186 = scmp.eq.s32.totalorder %s53, 3
      %p187 = por %p185, %p186
      %p189 = scmp.ne.s32.totalorder %s172, %s188
      %p190 = scmp.eq.s32.totalorder %s53, 0
      %p191 = por %p189, %p190
      %s192 = ssub.s32 %s55, %s62
      %p193 = scmp.eq.s32.totalorder %s192, 0
      %s195 = sadd.s32 %s194, 1
      %s196 = scalar_select %p193, %s194, %s195
      %p199 = pneg %p193
      %p200 = scmp.eq.s32.totalorder %s47, 3
      %p201 = por %p199, %p200
      %p202 = scmp.ne.s32.totalorder %s194, %s197
      %p203 = scmp.eq.s32.totalorder %s47, 0
      %p204 = por %p202, %p203
      %p205 = scmp.ne.s32.totalorder %s194, %s197
      %p206 = scmp.eq.s32.totalorder %s52, 3
      %p207 = por %p205, %p206
      %p208 = scmp.ne.s32.totalorder %s197, %s198
      %p209 = scmp.eq.s32.totalorder %s52, 0
      %p210 = por %p208, %p209
      %p211 = scmp.ne.s32.totalorder %s197, %s198
      %p212 = scmp.eq.s32.totalorder %s53, 3
      %p213 = por %p211, %p212
      %p215 = scmp.ne.s32.totalorder %s198, %s214
      %p216 = scmp.eq.s32.totalorder %s53, 0
      %p217 = por %p215, %p216
      %s218 = ssub.s32 %s55, %s62
      %p219 = scmp.eq.s32.totalorder %s218, 0
      %s221 = sadd.s32 %s220, 1
      %s222 = scalar_select %p219, %s220, %s221
      %p225 = pneg %p219
      %p226 = scmp.eq.s32.totalorder %s47, 3
      %p227 = por %p225, %p226
      %p228 = scmp.ne.s32.totalorder %s220, %s223
      %p229 = scmp.eq.s32.totalorder %s47, 0
      %p230 = por %p228, %p229
      %p231 = scmp.ne.s32.totalorder %s220, %s223
      %p232 = scmp.eq.s32.totalorder %s52, 3
      %p233 = por %p231, %p232
      %p234 = scmp.ne.s32.totalorder %s223, %s224
      %p235 = scmp.eq.s32.totalorder %s52, 0
      %p236 = por %p234, %p235
      %p237 = scmp.ne.s32.totalorder %s223, %s224
      %p238 = scmp.eq.s32.totalorder %s53, 3
      %p239 = por %p237, %p238
      %p241 = scmp.ne.s32.totalorder %s224, %s240
      %p242 = scmp.eq.s32.totalorder %s53, 0
      %p243 = por %p241, %p242
      %s244 = ssub.s32 %s55, %s62
      %p245 = scmp.eq.s32.totalorder %s244, 0
      %s247 = sadd.s32 %s246, 1
      %s248 = scalar_select %p245, %s246, %s247
      %p251 = pneg %p245
      %p252 = scmp.eq.s32.totalorder %s47, 3
      %p253 = por %p251, %p252
      %p254 = scmp.ne.s32.totalorder %s246, %s249
      %p255 = scmp.eq.s32.totalorder %s47, 0
      %p256 = por %p254, %p255
      %p257 = scmp.ne.s32.totalorder %s246, %s249
      %p258 = scmp.eq.s32.totalorder %s52, 3
      %p259 = por %p257, %p258
      %p260 = scmp.ne.s32.totalorder %s249, %s250
      %p261 = scmp.eq.s32.totalorder %s52, 0
      %p262 = por %p260, %p261
      %p263 = scmp.ne.s32.totalorder %s249, %s250
      %p264 = scmp.eq.s32.totalorder %s53, 3
      %p265 = por %p263, %p264
      %p267 = scmp.ne.s32.totalorder %s250, %s266
      %p268 = scmp.eq.s32.totalorder %s53, 0
      %p269 = por %p267, %p268
      %s270 = ssub.s32 %s55, %s62
      %p271 = scmp.eq.s32.totalorder %s270, 0
      %s273 = sadd.s32 %s272, 1
      %s274 = scalar_select %p271, %s272, %s273
      %p277 = pneg %p271
      %p278 = scmp.eq.s32.totalorder %s47, 3
      %p279 = por %p277, %p278
      %p280 = scmp.ne.s32.totalorder %s272, %s275
      %p281 = scmp.eq.s32.totalorder %s47, 0
      %p282 = por %p280, %p281
      %p283 = scmp.ne.s32.totalorder %s272, %s275
      %p284 = scmp.eq.s32.totalorder %s52, 3
      %p285 = por %p283, %p284
      %p286 = scmp.ne.s32.totalorder %s275, %s276
      %p287 = scmp.eq.s32.totalorder %s52, 0
      %p288 = por %p286, %p287
      %p289 = scmp.ne.s32.totalorder %s275, %s276
      %p290 = scmp.eq.s32.totalorder %s53, 3
      %p291 = por %p289, %p290
      %p293 = scmp.ne.s32.totalorder %s276, %s292
      %p294 = scmp.eq.s32.totalorder %s53, 0
      %p295 = por %p293, %p294
      %s296 = ssub.s32 %s55, %s62
      %p297 = scmp.eq.s32.totalorder %s296, 0
      %s299 = sadd.s32 %s298, 1
      %s300 = scalar_select %p297, %s298, %s299
      %p303 = pneg %p297
      %p304 = scmp.eq.s32.totalorder %s47, 3
      %p305 = por %p303, %p304
      %p306 = scmp.ne.s32.totalorder %s298, %s301
      %p307 = scmp.eq.s32.totalorder %s47, 0
      %p308 = por %p306, %p307
      %p309 = scmp.ne.s32.totalorder %s298, %s301
      %p310 = scmp.eq.s32.totalorder %s52, 3
      %p311 = por %p309, %p310
      %p312 = scmp.ne.s32.totalorder %s301, %s302
      %p313 = scmp.eq.s32.totalorder %s52, 0
      %p314 = por %p312, %p313
      %p315 = scmp.ne.s32.totalorder %s301, %s302
      %p316 = scmp.eq.s32.totalorder %s53, 3
      %p317 = por %p315, %p316
      %p319 = scmp.ne.s32.totalorder %s302, %s318
      %p320 = scmp.eq.s32.totalorder %s53, 0
      %p321 = por %p319, %p320
      %s322 = ssub.s32 %s55, %s62
      %p323 = scmp.eq.s32.totalorder %s322, 0
      %s325 = sadd.s32 %s324, 1
      %s326 = scalar_select %p323, %s324, %s325
      %p329 = pneg %p323
      %p330 = scmp.eq.s32.totalorder %s47, 3
      %p331 = por %p329, %p330
      %p332 = scmp.ne.s32.totalorder %s324, %s327
      %p333 = scmp.eq.s32.totalorder %s47, 0
      %p334 = por %p332, %p333
      %p335 = scmp.ne.s32.totalorder %s324, %s327
      %p336 = scmp.eq.s32.totalorder %s52, 3
      %p337 = por %p335, %p336
      %p338 = scmp.ne.s32.totalorder %s327, %s328
      %p339 = scmp.eq.s32.totalorder %s52, 0
      %p340 = por %p338, %p339
      %p341 = scmp.ne.s32.totalorder %s327, %s328
      %p342 = scmp.eq.s32.totalorder %s53, 3
      %p343 = por %p341, %p342
      %p345 = scmp.ne.s32.totalorder %s328, %s344
      %p346 = scmp.eq.s32.totalorder %s53, 0
      %p347 = por %p345, %p346
      %s348 = ssub.s32 %s55, %s62
      %p349 = scmp.eq.s32.totalorder %s348, 0
      %s351 = sadd.s32 %s350, 1
      %s352 = scalar_select %p349, %s350, %s351
      %p355 = pneg %p349
      %p356 = scmp.eq.s32.totalorder %s47, 3
      %p357 = por %p355, %p356
      %p358 = scmp.ne.s32.totalorder %s350, %s353
      %p359 = scmp.eq.s32.totalorder %s47, 0
      %p360 = por %p358, %p359
      %p361 = scmp.ne.s32.totalorder %s350, %s353
      %p362 = scmp.eq.s32.totalorder %s52, 3
      %p363 = por %p361, %p362
      %p364 = scmp.ne.s32.totalorder %s353, %s354
      %p365 = scmp.eq.s32.totalorder %s52, 0
      %p366 = por %p364, %p365
      %p367 = scmp.ne.s32.totalorder %s353, %s354
      %p368 = scmp.eq.s32.totalorder %s53, 3
      %p369 = por %p367, %p368
      %p371 = scmp.ne.s32.totalorder %s354, %s370
      %p372 = scmp.eq.s32.totalorder %s53, 0
      %p373 = por %p371, %p372
      %s374 = ssub.s32 %s55, %s62
      %p375 = scmp.eq.s32.totalorder %s374, 0
      %s377 = sadd.s32 %s376, 1
      %s378 = scalar_select %p375, %s376, %s377
      %p381 = pneg %p375
      %p382 = scmp.eq.s32.totalorder %s47, 3
      %p383 = por %p381, %p382
      %p384 = scmp.ne.s32.totalorder %s376, %s379
      %p385 = scmp.eq.s32.totalorder %s47, 0
      %p386 = por %p384, %p385
      %p387 = scmp.ne.s32.totalorder %s376, %s379
      %p388 = scmp.eq.s32.totalorder %s52, 3
      %p389 = por %p387, %p388
      %p390 = scmp.ne.s32.totalorder %s379, %s380
      %p391 = scmp.eq.s32.totalorder %s52, 0
      %p392 = por %p390, %p391
      %p393 = scmp.ne.s32.totalorder %s379, %s380
      %p394 = scmp.eq.s32.totalorder %s53, 3
      %p395 = por %p393, %p394
      %p397 = scmp.ne.s32.totalorder %s380, %s396
      %p398 = scmp.eq.s32.totalorder %s53, 0
      %p399 = por %p397, %p398
      %s400 = ssub.s32 %s55, %s62
      %p401 = scmp.eq.s32.totalorder %s400, 0
      %s403 = sadd.s32 %s402, 1
      %s404 = scalar_select %p401, %s402, %s403
      %p407 = pneg %p401
      %p408 = scmp.eq.s32.totalorder %s47, 3
      %p409 = por %p407, %p408
      %p410 = scmp.ne.s32.totalorder %s402, %s405
      %p411 = scmp.eq.s32.totalorder %s47, 0
      %p412 = por %p410, %p411
      %p413 = scmp.ne.s32.totalorder %s402, %s405
      %p414 = scmp.eq.s32.totalorder %s52, 3
      %p415 = por %p413, %p414
      %p416 = scmp.ne.s32.totalorder %s405, %s406
      %p417 = scmp.eq.s32.totalorder %s52, 0
      %p418 = por %p416, %p417
      %p419 = scmp.ne.s32.totalorder %s405, %s406
      %p420 = scmp.eq.s32.totalorder %s53, 3
      %p421 = por %p419, %p420
      %p423 = scmp.ne.s32.totalorder %s406, %s422
      %p424 = scmp.eq.s32.totalorder %s53, 0
      %p425 = por %p423, %p424
      %s426 = ssub.s32 %s55, %s62
      %p427 = scmp.eq.s32.totalorder %s426, 0
      %s429 = sadd.s32 %s428, 1
      %s430 = scalar_select %p427, %s428, %s429
      %p433 = pneg %p427
      %p434 = scmp.eq.s32.totalorder %s47, 3
      %p435 = por %p433, %p434
      %p436 = scmp.ne.s32.totalorder %s428, %s431
      %p437 = scmp.eq.s32.totalorder %s47, 0
      %p438 = por %p436, %p437
      %p439 = scmp.ne.s32.totalorder %s428, %s431
      %p440 = scmp.eq.s32.totalorder %s52, 3
      %p441 = por %p439, %p440
      %p442 = scmp.ne.s32.totalorder %s431, %s432
      %p443 = scmp.eq.s32.totalorder %s52, 0
      %p444 = por %p442, %p443
      %p445 = scmp.ne.s32.totalorder %s431, %s432
      %p446 = scmp.eq.s32.totalorder %s53, 3
      %p447 = por %p445, %p446
      %p449 = scmp.ne.s32.totalorder %s432, %s448
      %p450 = scmp.eq.s32.totalorder %s53, 0
      %p451 = por %p449, %p450
      %s452 = ssub.s32 %s55, %s62
      %p453 = scmp.eq.s32.totalorder %s452, 0
      %s455 = sadd.s32 %s454, 1
      %s456 = scalar_select %p453, %s454, %s455
      %p459 = pneg %p453
      %p460 = scmp.eq.s32.totalorder %s47, 3
      %p461 = por %p459, %p460
      %p462 = scmp.ne.s32.totalorder %s454, %s457
      %p463 = scmp.eq.s32.totalorder %s47, 0
      %p464 = por %p462, %p463
      %p465 = scmp.ne.s32.totalorder %s454, %s457
      %p466 = scmp.eq.s32.totalorder %s52, 3
      %p467 = por %p465, %p466
      %p468 = scmp.ne.s32.totalorder %s457, %s458
      %p469 = scmp.eq.s32.totalorder %s52, 0
      %p470 = por %p468, %p469
      %p471 = scmp.ne.s32.totalorder %s457, %s458
      %p472 = scmp.eq.s32.totalorder %s53, 3
      %p473 = por %p471, %p472
      %p475 = scmp.ne.s32.totalorder %s458, %s474
      %p476 = scmp.eq.s32.totalorder %s53, 0
      %p477 = por %p475, %p476
      %s478 = ssub.s32 %s55, %s62
      %p479 = scmp.eq.s32.totalorder %s478, 0
      %s481 = sadd.s32 %s480, 1
      %s482 = scalar_select %p479, %s480, %s481
      %p485 = pneg %p479
      %p486 = scmp.eq.s32.totalorder %s47, 3
      %p487 = por %p485, %p486
      %p488 = scmp.ne.s32.totalorder %s480, %s483
      %p489 = scmp.eq.s32.totalorder %s47, 0
      %p490 = por %p488, %p489
      %p491 = scmp.ne.s32.totalorder %s480, %s483
      %p492 = scmp.eq.s32.totalorder %s52, 3
      %p493 = por %p491, %p492
      %p494 = scmp.ne.s32.totalorder %s483, %s484
      %p495 = scmp.eq.s32.totalorder %s52, 0
      %p496 = por %p494, %p495
      %p497 = scmp.ne.s32.totalorder %s483, %s484
      %p498 = scmp.eq.s32.totalorder %s53, 3
      %p499 = por %p497, %p498
      %p501 = scmp.ne.s32.totalorder %s484, %s500
      %p502 = scmp.eq.s32.totalorder %s53, 0
      %p503 = por %p501, %p502
      %s504 = ssub.s32 %s55, %s62
      %p505 = scmp.eq.s32.totalorder %s504, 0
      %s507 = sadd.s32 %s506, 1
      %s508 = scalar_select %p505, %s506, %s507
      %p511 = pneg %p505
      %p512 = scmp.eq.s32.totalorder %s47, 3
      %p513 = por %p511, %p512
      %p514 = scmp.ne.s32.totalorder %s506, %s509
      %p515 = scmp.eq.s32.totalorder %s47, 0
      %p516 = por %p514, %p515
      %p517 = scmp.ne.s32.totalorder %s506, %s509
      %p518 = scmp.eq.s32.totalorder %s52, 3
      %p519 = por %p517, %p518
      %p520 = scmp.ne.s32.totalorder %s509, %s510
      %p521 = scmp.eq.s32.totalorder %s52, 0
      %p522 = por %p520, %p521
      %p523 = scmp.ne.s32.totalorder %s509, %s510
      %p524 = scmp.eq.s32.totalorder %s53, 3
      %p525 = por %p523, %p524
      %p527 = scmp.ne.s32.totalorder %s510, %s526
      %p528 = scmp.eq.s32.totalorder %s53, 0
      %p529 = por %p527, %p528
      %s530 = ssub.s32 %s55, %s62
      %p531 = scmp.eq.s32.totalorder %s530, 0
      %s533 = sadd.s32 %s532, 1
      %s534 = scalar_select %p531, %s532, %s533
      %p537 = pneg %p531
      %p538 = scmp.eq.s32.totalorder %s47, 3
      %p539 = por %p537, %p538
      %p540 = scmp.ne.s32.totalorder %s532, %s535
      %p541 = scmp.eq.s32.totalorder %s47, 0
      %p542 = por %p540, %p541
      %p543 = scmp.ne.s32.totalorder %s532, %s535
      %p544 = scmp.eq.s32.totalorder %s52, 3
      %p545 = por %p543, %p544
      %p546 = scmp.ne.s32.totalorder %s535, %s536
      %p547 = scmp.eq.s32.totalorder %s52, 0
      %p548 = por %p546, %p547
      %p549 = scmp.ne.s32.totalorder %s535, %s536
      %p550 = scmp.eq.s32.totalorder %s53, 3
      %p551 = por %p549, %p550
      %p553 = scmp.ne.s32.totalorder %s536, %s552
      %p554 = scmp.eq.s32.totalorder %s53, 0
      %p555 = por %p553, %p554
      %s556 = ssub.s32 %s55, %s62
      %p557 = scmp.eq.s32.totalorder %s556, 0
      %s559 = sadd.s32 %s558, 1
      %s560 = scalar_select %p557, %s558, %s559
      %p563 = pneg %p557
      %p564 = scmp.eq.s32.totalorder %s47, 3
      %p565 = por %p563, %p564
      %p566 = scmp.ne.s32.totalorder %s558, %s561
      %p567 = scmp.eq.s32.totalorder %s47, 0
      %p568 = por %p566, %p567
      %p569 = scmp.ne.s32.totalorder %s558, %s561
      %p570 = scmp.eq.s32.totalorder %s52, 3
      %p571 = por %p569, %p570
      %p572 = scmp.ne.s32.totalorder %s561, %s562
      %p573 = scmp.eq.s32.totalorder %s52, 0
      %p574 = por %p572, %p573
      %p575 = scmp.ne.s32.totalorder %s561, %s562
      %p576 = scmp.eq.s32.totalorder %s53, 3
      %p577 = por %p575, %p576
      %p579 = scmp.ne.s32.totalorder %s562, %s578
      %p580 = scmp.eq.s32.totalorder %s53, 0
      %p581 = por %p579, %p580
      %s582 = ssub.s32 %s54, %s66
      %p583 = scmp.eq.s32.totalorder %s582, 0
      %s585 = sadd.s32 %s584, 1
      %s586 = scalar_select %p583, %s584, %s585
      %p589 = pneg %p583
      %p590 = scmp.eq.s32.totalorder %s47, 3
      %p591 = por %p589, %p590
      %p592 = scmp.ne.s32.totalorder %s584, %s587
      %p593 = scmp.eq.s32.totalorder %s47, 0
      %p594 = por %p592, %p593
      %p595 = scmp.ne.s32.totalorder %s584, %s587
      %p596 = scmp.eq.s32.totalorder %s52, 3
      %p597 = por %p595, %p596
      %p598 = scmp.ne.s32.totalorder %s587, %s588
      %p599 = scmp.eq.s32.totalorder %s52, 0
      %p600 = por %p598, %p599
      %p601 = scmp.ne.s32.totalorder %s587, %s588
      %p602 = scmp.eq.s32.totalorder %s53, 3
      %p603 = por %p601, %p602
      %p605 = scmp.ne.s32.totalorder %s588, %s604
      %p606 = scmp.eq.s32.totalorder %s53, 0
      %p607 = por %p605, %p606
      %p608 = scmp.le.s32.totalorder 1, %s47
      %p609 = scmp.lt.s32.totalorder %s47, 5
      %p610 = pnand %p608, %p609
      %p611 = pneg %p610
      // Predicated region
      $region9: #{tpu_custom_call.1} parent=5 // pred_check
        _
      $region10: #{tpu_custom_call.1} parent=5 // pred_check_branch
        %613 = sbr.rel (%p610) target = $region12
      $region11: #{tpu_custom_call.1} parent=5 // pred_region
        %s614 = ssub.s32 %s47, 1
        // Predicated region
        $region13: #{tpu_custom_call.1} parent=11 // pred_check
          %p615 = pneg %p132
        $region14: #{tpu_custom_call.1} parent=11 // pred_check_branch
          %617 = sbr.rel (%p615) target = $region16
        $region15: #{tpu_custom_call.1} parent=11 // pred_region
          %s619 = ssub.s32 1024, 1024
          %620 = vsyncadd [#allocation7], %s619
          %s621 = sshll.u32 [#allocation8], 4
          %s622 = int_to_ptr.vmem [resolvable:$true] %s621
          %627 = dma.hbm_to_vmem [thread:$0]  %s2, 1024, %s622, [#allocation7], 64, 64, 4
        $region16: #{tpu_custom_call.1} parent=11 // pred_fallthru
          _
      $region12: #{tpu_custom_call.1} parent=5 // pred_fallthru
        _
      %p628 = scmp.lt.s32.totalorder %s47, 4
      // Predicated region
      $region17: #{tpu_custom_call.1} parent=5 // pred_check
        %p629 = pneg %p628
      $region18: #{tpu_custom_call.1} parent=5 // pred_check_branch
        %631 = sbr.rel (%p629) target = $region20
      $region19: #{tpu_custom_call.1} parent=5 // pred_region
        // Predicated region
        $region21: #{tpu_custom_call.1} parent=19 // pred_check
          %p632 = pneg %p79
        $region22: #{tpu_custom_call.1} parent=19 // pred_check_branch
          %634 = sbr.rel (%p632) target = $region24
        $region23: #{tpu_custom_call.1} parent=19 // pred_region
          %s635 = sand.u32 %s69, 1
          %s636 = scalar_lea.sflag [#allocation4], %s635
          %s637 = sand.u32 %s69, 1
          %s638 = smul.addr %s637, 4
          %s639 = scalar_lea.vmem [#allocation3], %s638
          %s641 = ssub.s32 64, 64
          %642 = vsyncadd %s636, %s641
          %s643 = smul.addr %s54, 64
          %s644 = scalar_lea.hbm %s0, %s643
          %s646 = sshll.u32 %s639, 4
          %s647 = int_to_ptr.vmem [resolvable:$true] %s646
          %649 = dma.hbm_to_vmem [thread:$0]  %s644, 64, %s647, %s636
        $region24: #{tpu_custom_call.1} parent=19 // pred_fallthru
          _
        // Predicated region
        $region25: #{tpu_custom_call.1} parent=19 // pred_check
          %p650 = pneg %p105
        $region26: #{tpu_custom_call.1} parent=19 // pred_check_branch
          %652 = sbr.rel (%p650) target = $region28
        $region27: #{tpu_custom_call.1} parent=19 // pred_region
          %s653 = sand.u32 %s47, 1
          %s654 = scalar_lea.sflag [#allocation7], %s653
          %s655 = sand.u32 %s95, 1
          %s656 = smul.addr %s655, 4
          %s657 = scalar_lea.vmem [#allocation6], %s656
          %s659 = ssub.s32 64, 64
          %660 = vsyncadd %s654, %s659
          %s661 = smul.addr %s54, 64
          %s662 = scalar_lea.hbm %s1, %s661
          %s664 = sshll.u32 %s657, 4
          %s665 = int_to_ptr.vmem [resolvable:$true] %s664
          %667 = dma.hbm_to_vmem [thread:$0]  %s662, 64, %s665, %s654
        $region28: #{tpu_custom_call.1} parent=19 // pred_fallthru
          _
        // Predicated region
        $region29: #{tpu_custom_call.1} parent=19 // pred_check
          %p668 = pneg %p152
        $region30: #{tpu_custom_call.1} parent=19 // pred_check_branch
          %670 = sbr.rel (%p668) target = $region32
        $region31: #{tpu_custom_call.1} parent=19 // pred_region
          %s671 = sand.u32 %s47, 1
          %s672 = scalar_lea.sflag [#allocation10], %s671
          %s673 = sand.u32 %s142, 1
          %s674 = smul.addr %s673, 192
          %s675 = scalar_lea.vmem [#allocation9], %s674
          %s677 = ssub.s32 3072, 3072
          %678 = vsyncadd %s672, %s677
          %s679 = smul.addr %s55, 48
          %s680 = smul.addr %s679, 64
          %s681 = scalar_lea.hbm %s3, %s680
          %s682 = sshll.u32 %s675, 4
          %s683 = int_to_ptr.vmem [resolvable:$true] %s682
          %688 = dma.hbm_to_vmem [thread:$0]  %s681, 3072, %s683, %s672, 192, 192, 12
        $region32: #{tpu_custom_call.1} parent=19 // pred_fallthru
          _
        // Predicated region
        $region33: #{tpu_custom_call.1} parent=19 // pred_check
          %p689 = pneg %p178
        $region34: #{tpu_custom_call.1} parent=19 // pred_check_branch
          %691 = sbr.rel (%p689) target = $region36
        $region35: #{tpu_custom_call.1} parent=19 // pred_region
          %s692 = sand.u32 %s47, 1
          %s693 = scalar_lea.sflag [#allocation10], %s692
          %s694 = sand.u32 %s168, 1
          %s695 = smul.addr %s694, 64
          %s696 = scalar_lea.vmem [#allocation11], %s695
          %s698 = ssub.s32 1024, 1024
          %699 = vsyncadd %s693, %s698
          %s700 = smul.addr %s55, 16
          %s701 = smul.addr %s700, 64
          %s702 = scalar_lea.hbm %s4, %s701
          %s703 = sshll.u32 %s696, 4
          %s704 = int_to_ptr.vmem [resolvable:$true] %s703
          %709 = dma.hbm_to_vmem [thread:$0]  %s702, 1024, %s704, %s693, 64, 64, 4
        $region36: #{tpu_custom_call.1} parent=19 // pred_fallthru
          _
        // Predicated region
        $region37: #{tpu_custom_call.1} parent=19 // pred_check
          %p710 = pneg %p204
        $region38: #{tpu_custom_call.1} parent=19 // pred_check_branch
          %712 = sbr.rel (%p710) target = $region40
        $region39: #{tpu_custom_call.1} parent=19 // pred_region
          %p713 = scmp.lt.s32.totalorder %s55, 1
          %s714 = scalar_select %p713, %s55, 1
          %s715 = scalar_lea.vmem %s5, %s714
        $region40: #{tpu_custom_call.1} parent=19 // pred_fallthru
          _
        // Predicated region
        $region41: #{tpu_custom_call.1} parent=19 // pred_check
          %p716 = pneg %p230
        $region42: #{tpu_custom_call.1} parent=19 // pred_check_branch
          %718 = sbr.rel (%p716) target = $region44
        $region43: #{tpu_custom_call.1} parent=19 // pred_region
          %s719 = sand.u32 %s47, 1
          %s720 = scalar_lea.sflag [#allocation13], %s719
          %s721 = sand.u32 %s220, 1
          %s722 = smul.addr %s721, 64
          %s723 = scalar_lea.vmem [#allocation12], %s722
          %s725 = ssub.s32 1024, 1024
          %726 = vsyncadd %s720, %s725
          %s727 = smul.addr %s55, 16
          %s728 = smul.addr %s727, 64
          %s729 = scalar_lea.hbm %s6, %s728
          %s730 = sshll.u32 %s723, 4
          %s731 = int_to_ptr.vmem [resolvable:$true] %s730
          %736 = dma.hbm_to_vmem [thread:$0]  %s729, 1024, %s731, %s720, 64, 64, 4
        $region44: #{tpu_custom_call.1} parent=19 // pred_fallthru
          _
        // Predicated region
        $region45: #{tpu_custom_call.1} parent=19 // pred_check
          %p737 = pneg %p256
        $region46: #{tpu_custom_call.1} parent=19 // pred_check_branch
          %739 = sbr.rel (%p737) target = $region48
        $region47: #{tpu_custom_call.1} parent=19 // pred_region
          %s740 = sand.u32 %s47, 1
          %s741 = scalar_lea.sflag [#allocation13], %s740
          %s742 = sand.u32 %s246, 1
          %s743 = smul.addr %s742, 128
          %s744 = scalar_lea.vmem [#allocation14], %s743
          %s746 = ssub.s32 2048, 2048
          %747 = vsyncadd %s741, %s746
          %s748 = smul.addr %s55, 32
          %s749 = smul.addr %s748, 64
          %s750 = scalar_lea.hbm %s7, %s749
          %s751 = sshll.u32 %s744, 4
          %s752 = int_to_ptr.vmem [resolvable:$true] %s751
          %757 = dma.hbm_to_vmem [thread:$0]  %s750, 2048, %s752, %s741, 128, 128, 8
        $region48: #{tpu_custom_call.1} parent=19 // pred_fallthru
          _
        // Predicated region
        $region49: #{tpu_custom_call.1} parent=19 // pred_check
          %p758 = pneg %p282
        $region50: #{tpu_custom_call.1} parent=19 // pred_check_branch
          %760 = sbr.rel (%p758) target = $region52
        $region51: #{tpu_custom_call.1} parent=19 // pred_region
          %s761 = sand.u32 %s47, 1
          %s762 = scalar_lea.sflag [#allocation16], %s761
          %s763 = sand.u32 %s272, 1
          %s764 = smul.addr %s763, 64
          %s765 = scalar_lea.vmem [#allocation15], %s764
          %s767 = ssub.s32 1024, 1024
          %768 = vsyncadd %s762, %s767
          %s769 = smul.addr %s55, 16
          %s770 = smul.addr %s769, 64
          %s771 = scalar_lea.hbm %s8, %s770
          %s772 = sshll.u32 %s765, 4
          %s773 = int_to_ptr.vmem [resolvable:$true] %s772
          %778 = dma.hbm_to_vmem [thread:$0]  %s771, 1024, %s773, %s762, 64, 64, 4
        $region52: #{tpu_custom_call.1} parent=19 // pred_fallthru
          _
        // Predicated region
        $region53: #{tpu_custom_call.1} parent=19 // pred_check
          %p779 = pneg %p308
        $region54: #{tpu_custom_call.1} parent=19 // pred_check_branch
          %781 = sbr.rel (%p779) target = $region56
        $region55: #{tpu_custom_call.1} parent=19 // pred_region
          %p782 = scmp.lt.s32.totalorder %s55, 1
          %s783 = scalar_select %p782, %s55, 1
          %s784 = scalar_lea.vmem %s9, %s783
        $region56: #{tpu_custom_call.1} parent=19 // pred_fallthru
          _
        // Predicated region
        $region57: #{tpu_custom_call.1} parent=19 // pred_check
          %p785 = pneg %p334
        $region58: #{tpu_custom_call.1} parent=19 // pred_check_branch
          %787 = sbr.rel (%p785) target = $region60
        $region59: #{tpu_custom_call.1} parent=19 // pred_region
          %p788 = scmp.lt.s32.totalorder %s55, 1
          %s789 = scalar_select %p788, %s55, 1
          %s790 = scalar_lea.vmem %s10, %s789
        $region60: #{tpu_custom_call.1} parent=19 // pred_fallthru
          _
        // Predicated region
        $region61: #{tpu_custom_call.1} parent=19 // pred_check
          %p791 = pneg %p360
        $region62: #{tpu_custom_call.1} parent=19 // pred_check_branch
          %793 = sbr.rel (%p791) target = $region64
        $region63: #{tpu_custom_call.1} parent=19 // pred_region
          %p794 = scmp.lt.s32.totalorder %s55, 1
          %s795 = scalar_select %p794, %s55, 1
          %s796 = scalar_lea.vmem %s11, %s795
        $region64: #{tpu_custom_call.1} parent=19 // pred_fallthru
          _
        // Predicated region
        $region65: #{tpu_custom_call.1} parent=19 // pred_check
          %p797 = pneg %p386
        $region66: #{tpu_custom_call.1} parent=19 // pred_check_branch
          %799 = sbr.rel (%p797) target = $region68
        $region67: #{tpu_custom_call.1} parent=19 // pred_region
          %p800 = scmp.lt.s32.totalorder %s55, 1
          %s801 = scalar_select %p800, %s55, 1
          %s802 = scalar_lea.vmem %s12, %s801
        $region68: #{tpu_custom_call.1} parent=19 // pred_fallthru
          _
        // Predicated region
        $region69: #{tpu_custom_call.1} parent=19 // pred_check
          %p803 = pneg %p412
        $region70: #{tpu_custom_call.1} parent=19 // pred_check_branch
          %805 = sbr.rel (%p803) target = $region72
        $region71: #{tpu_custom_call.1} parent=19 // pred_region
          %p806 = scmp.lt.s32.totalorder %s55, 1
          %s807 = scalar_select %p806, %s55, 1
          %s808 = scalar_lea.vmem %s13, %s807
        $region72: #{tpu_custom_call.1} parent=19 // pred_fallthru
          _
        // Predicated region
        $region73: #{tpu_custom_call.1} parent=19 // pred_check
          %p809 = pneg %p438
        $region74: #{tpu_custom_call.1} parent=19 // pred_check_branch
          %811 = sbr.rel (%p809) target = $region76
        $region75: #{tpu_custom_call.1} parent=19 // pred_region
          %p812 = scmp.lt.s32.totalorder %s55, 1
          %s813 = scalar_select %p812, %s55, 1
          %s814 = scalar_lea.vmem %s14, %s813
        $region76: #{tpu_custom_call.1} parent=19 // pred_fallthru
          _
        // Predicated region
        $region77: #{tpu_custom_call.1} parent=19 // pred_check
          %p815 = pneg %p464
        $region78: #{tpu_custom_call.1} parent=19 // pred_check_branch
          %817 = sbr.rel (%p815) target = $region80
        $region79: #{tpu_custom_call.1} parent=19 // pred_region
          %p818 = scmp.lt.s32.totalorder %s55, 1
          %s819 = scalar_select %p818, %s55, 1
          %s820 = scalar_lea.vmem %s15, %s819
        $region80: #{tpu_custom_call.1} parent=19 // pred_fallthru
          _
        // Predicated region
        $region81: #{tpu_custom_call.1} parent=19 // pred_check
          %p821 = pneg %p490
        $region82: #{tpu_custom_call.1} parent=19 // pred_check_branch
          %823 = sbr.rel (%p821) target = $region84
        $region83: #{tpu_custom_call.1} parent=19 // pred_region
          %s824 = sand.u32 %s47, 1
          %s825 = scalar_lea.sflag [#allocation16], %s824
          %s826 = sand.u32 %s480, 1
          %s827 = smul.addr %s826, 64
          %s828 = scalar_lea.vmem [#allocation17], %s827
          %s830 = ssub.s32 1024, 1024
          %831 = vsyncadd %s825, %s830
          %s832 = smul.addr %s55, 16
          %s833 = smul.addr %s832, 64
          %s834 = scalar_lea.hbm %s16, %s833
          %s835 = sshll.u32 %s828, 4
          %s836 = int_to_ptr.vmem [resolvable:$true] %s835
          %841 = dma.hbm_to_vmem [thread:$0]  %s834, 1024, %s836, %s825, 64, 64, 4
        $region84: #{tpu_custom_call.1} parent=19 // pred_fallthru
          _
        // Predicated region
        $region85: #{tpu_custom_call.1} parent=19 // pred_check
          %p842 = pneg %p516
        $region86: #{tpu_custom_call.1} parent=19 // pred_check_branch
          %844 = sbr.rel (%p842) target = $region88
        $region87: #{tpu_custom_call.1} parent=19 // pred_region
          %p845 = scmp.lt.s32.totalorder %s55, 1
          %s846 = scalar_select %p845, %s55, 1
          %s847 = scalar_lea.vmem %s17, %s846
        $region88: #{tpu_custom_call.1} parent=19 // pred_fallthru
          _
        // Predicated region
        $region89: #{tpu_custom_call.1} parent=19 // pred_check
          %p848 = pneg %p542
        $region90: #{tpu_custom_call.1} parent=19 // pred_check_branch
          %850 = sbr.rel (%p848) target = $region92
        $region91: #{tpu_custom_call.1} parent=19 // pred_region
          %s851 = sand.u32 %s532, 1
          %s852 = scalar_lea.sflag [#allocation19], %s851
          %s853 = sand.u32 %s532, 1
          %s854 = smul.addr %s853, 64
          %s855 = scalar_lea.vmem [#allocation18], %s854
          %s857 = ssub.s32 1024, 1024
          %858 = vsyncadd %s852, %s857
          %s859 = smul.addr %s55, 16
          %s860 = smul.addr %s859, 64
          %s861 = scalar_lea.hbm %s18, %s860
          %s862 = sshll.u32 %s855, 4
          %s863 = int_to_ptr.vmem [resolvable:$true] %s862
          %868 = dma.hbm_to_vmem [thread:$0]  %s861, 1024, %s863, %s852, 64, 64, 4
        $region92: #{tpu_custom_call.1} parent=19 // pred_fallthru
          _
        // Predicated region
        $region93: #{tpu_custom_call.1} parent=19 // pred_check
          %p869 = pneg %p568
        $region94: #{tpu_custom_call.1} parent=19 // pred_check_branch
          %871 = sbr.rel (%p869) target = $region96
        $region95: #{tpu_custom_call.1} parent=19 // pred_region
          %p872 = scmp.lt.s32.totalorder %s55, 1
          %s873 = scalar_select %p872, %s55, 1
          %s874 = scalar_lea.vmem %s19, %s873
        $region96: #{tpu_custom_call.1} parent=19 // pred_fallthru
          _
      $region20: #{tpu_custom_call.1} parent=5 // pred_fallthru
        _
      %p875 = scmp.le.s32.totalorder 1, %s47
      %p876 = scmp.lt.s32.totalorder %s47, 5
      %p877 = pnand %p875, %p876
      %p878 = pneg %p877
      // Predicated region
      $region97: #{tpu_custom_call.1} parent=5 // pred_check
        _
      $region98: #{tpu_custom_call.1} parent=5 // pred_check_branch
        %880 = sbr.rel (%p877) target = $region100
      $region99: #{tpu_custom_call.1} parent=5 // pred_region
        %s881 = ssub.s32 %s47, 1
        %s882 = sand.u32 %s72, 1
        %s883 = scalar_lea.sflag [#allocation4], %s882
        %s884 = sand.u32 %s72, 1
        %s885 = smul.addr %s884, 4
        %s886 = scalar_lea.vmem [#allocation3], %s885
        // Predicated region
        $region101: #{tpu_custom_call.1} parent=99 // pred_check
          %p887 = pneg %p85
        $region102: #{tpu_custom_call.1} parent=99 // pred_check_branch
          %889 = sbr.rel (%p887) target = $region104
        $region103: #{tpu_custom_call.1} parent=99 // pred_region
          %890 = dma.done %s883, 64
        $region104: #{tpu_custom_call.1} parent=99 // pred_fallthru
          _
        %s891 = sand.u32 %s52, 1
        %s892 = scalar_lea.sflag [#allocation7], %s891
        %s893 = sand.u32 %s98, 1
        %s894 = smul.addr %s893, 4
        %s895 = scalar_lea.vmem [#allocation6], %s894
        // Predicated region
        $region105: #{tpu_custom_call.1} parent=99 // pred_check
          %p896 = pneg %p111
        $region106: #{tpu_custom_call.1} parent=99 // pred_check_branch
          %898 = sbr.rel (%p896) target = $region108
        $region107: #{tpu_custom_call.1} parent=99 // pred_region
          %899 = dma.done %s892, 64
        $region108: #{tpu_custom_call.1} parent=99 // pred_fallthru
          _
        // Predicated region
        $region109: #{tpu_custom_call.1} parent=99 // pred_check
          %p900 = pneg %p132
        $region110: #{tpu_custom_call.1} parent=99 // pred_check_branch
          %902 = sbr.rel (%p900) target = $region112
        $region111: #{tpu_custom_call.1} parent=99 // pred_region
          %903 = dma.done [#allocation7], 1024
        $region112: #{tpu_custom_call.1} parent=99 // pred_fallthru
          _
        %s904 = sand.u32 %s52, 1
        %s905 = scalar_lea.sflag [#allocation10], %s904
        %s906 = sand.u32 %s145, 1
        %s907 = smul.addr %s906, 192
        %s908 = scalar_lea.vmem [#allocation9], %s907
        // Predicated region
        $region113: #{tpu_custom_call.1} parent=99 // pred_check
          %p909 = pneg %p158
        $region114: #{tpu_custom_call.1} parent=99 // pred_check_branch
          %911 = sbr.rel (%p909) target = $region116
        $region115: #{tpu_custom_call.1} parent=99 // pred_region
          %912 = dma.done %s905, 3072
        $region116: #{tpu_custom_call.1} parent=99 // pred_fallthru
          _
        %s913 = sand.u32 %s52, 1
        %s914 = scalar_lea.sflag [#allocation10], %s913
        %s915 = sand.u32 %s171, 1
        %s916 = smul.addr %s915, 64
        %s917 = scalar_lea.vmem [#allocation11], %s916
        // Predicated region
        $region117: #{tpu_custom_call.1} parent=99 // pred_check
          %p918 = pneg %p184
        $region118: #{tpu_custom_call.1} parent=99 // pred_check_branch
          %920 = sbr.rel (%p918) target = $region120
        $region119: #{tpu_custom_call.1} parent=99 // pred_region
          %921 = dma.done %s914, 1024
        $region120: #{tpu_custom_call.1} parent=99 // pred_fallthru
          _
        %s922 = sand.u32 %s52, 1
        %s923 = scalar_lea.sflag [#allocation13], %s922
        %s924 = sand.u32 %s223, 1
        %s925 = smul.addr %s924, 64
        %s926 = scalar_lea.vmem [#allocation12], %s925
        // Predicated region
        $region121: #{tpu_custom_call.1} parent=99 // pred_check
          %p927 = pneg %p236
        $region122: #{tpu_custom_call.1} parent=99 // pred_check_branch
          %929 = sbr.rel (%p927) target = $region124
        $region123: #{tpu_custom_call.1} parent=99 // pred_region
          %930 = dma.done %s923, 1024
        $region124: #{tpu_custom_call.1} parent=99 // pred_fallthru
          _
        %s931 = sand.u32 %s52, 1
        %s932 = scalar_lea.sflag [#allocation13], %s931
        %s933 = sand.u32 %s249, 1
        %s934 = smul.addr %s933, 128
        %s935 = scalar_lea.vmem [#allocation14], %s934
        // Predicated region
        $region125: #{tpu_custom_call.1} parent=99 // pred_check
          %p936 = pneg %p262
        $region126: #{tpu_custom_call.1} parent=99 // pred_check_branch
          %938 = sbr.rel (%p936) target = $region128
        $region127: #{tpu_custom_call.1} parent=99 // pred_region
          %939 = dma.done %s932, 2048
        $region128: #{tpu_custom_call.1} parent=99 // pred_fallthru
          _
        %s940 = sand.u32 %s52, 1
        %s941 = scalar_lea.sflag [#allocation16], %s940
        %s942 = sand.u32 %s275, 1
        %s943 = smul.addr %s942, 64
        %s944 = scalar_lea.vmem [#allocation15], %s943
        // Predicated region
        $region129: #{tpu_custom_call.1} parent=99 // pred_check
          %p945 = pneg %p288
        $region130: #{tpu_custom_call.1} parent=99 // pred_check_branch
          %947 = sbr.rel (%p945) target = $region132
        $region131: #{tpu_custom_call.1} parent=99 // pred_region
          %948 = dma.done %s941, 1024
        $region132: #{tpu_custom_call.1} parent=99 // pred_fallthru
          _
        %s949 = sand.u32 %s52, 1
        %s950 = scalar_lea.sflag [#allocation16], %s949
        %s951 = sand.u32 %s483, 1
        %s952 = smul.addr %s951, 64
        %s953 = scalar_lea.vmem [#allocation17], %s952
        // Predicated region
        $region133: #{tpu_custom_call.1} parent=99 // pred_check
          %p954 = pneg %p496
        $region134: #{tpu_custom_call.1} parent=99 // pred_check_branch
          %956 = sbr.rel (%p954) target = $region136
        $region135: #{tpu_custom_call.1} parent=99 // pred_region
          %957 = dma.done %s950, 1024
        $region136: #{tpu_custom_call.1} parent=99 // pred_fallthru
          _
        %s958 = sand.u32 %s535, 1
        %s959 = scalar_lea.sflag [#allocation19], %s958
        %s960 = sand.u32 %s535, 1
        %s961 = smul.addr %s960, 64
        %s962 = scalar_lea.vmem [#allocation18], %s961
        // Predicated region
        $region137: #{tpu_custom_call.1} parent=99 // pred_check
          %p963 = pneg %p548
        $region138: #{tpu_custom_call.1} parent=99 // pred_check_branch
          %965 = sbr.rel (%p963) target = $region140
        $region139: #{tpu_custom_call.1} parent=99 // pred_region
          %966 = dma.done %s959, 1024
        $region140: #{tpu_custom_call.1} parent=99 // pred_fallthru
          _
        %s967 = sand.u32 %s72, 1
        %s968 = scalar_lea.sflag [#allocation4], %s967
        %s969 = sand.u32 %s72, 1
        %s970 = smul.addr %s969, 4
        %s971 = scalar_lea.vmem [#allocation3], %s970
        %p972 = pneg %p85
        %p973 = pneg %p82
        %s974 = sand.u32 %s52, 1
        %s975 = scalar_lea.sflag [#allocation7], %s974
        %s976 = sand.u32 %s98, 1
        %s977 = smul.addr %s976, 4
        %s978 = scalar_lea.vmem [#allocation6], %s977
        %p979 = pneg %p111
        %p980 = pneg %p108
        %p981 = pneg %p132
        %p982 = pneg %p129
        %s983 = sand.u32 %s52, 1
        %s984 = scalar_lea.sflag [#allocation10], %s983
        %s985 = sand.u32 %s145, 1
        %s986 = smul.addr %s985, 192
        %s987 = scalar_lea.vmem [#allocation9], %s986
        %p988 = pneg %p158
        %p989 = pneg %p155
        %s990 = sand.u32 %s52, 1
        %s991 = scalar_lea.sflag [#allocation10], %s990
        %s992 = sand.u32 %s171, 1
        %s993 = smul.addr %s992, 64
        %s994 = scalar_lea.vmem [#allocation11], %s993
        %p995 = pneg %p184
        %p996 = pneg %p181
        %p997 = scmp.lt.s32.totalorder %s57, 1
        %s998 = scalar_select %p997, %s57, 1
        %s999 = scalar_lea.vmem %s5, %s998
        %p1000 = pneg %p210
        %p1001 = pneg %p207
        %s1002 = sand.u32 %s52, 1
        %s1003 = scalar_lea.sflag [#allocation13], %s1002
        %s1004 = sand.u32 %s223, 1
        %s1005 = smul.addr %s1004, 64
        %s1006 = scalar_lea.vmem [#allocation12], %s1005
        %p1007 = pneg %p236
        %p1008 = pneg %p233
        %s1009 = sand.u32 %s52, 1
        %s1010 = scalar_lea.sflag [#allocation13], %s1009
        %s1011 = sand.u32 %s249, 1
        %s1012 = smul.addr %s1011, 128
        %s1013 = scalar_lea.vmem [#allocation14], %s1012
        %p1014 = pneg %p262
        %p1015 = pneg %p259
        %s1016 = sand.u32 %s52, 1
        %s1017 = scalar_lea.sflag [#allocation16], %s1016
        %s1018 = sand.u32 %s275, 1
        %s1019 = smul.addr %s1018, 64
        %s1020 = scalar_lea.vmem [#allocation15], %s1019
        %p1021 = pneg %p288
        %p1022 = pneg %p285
        %p1023 = scmp.lt.s32.totalorder %s57, 1
        %s1024 = scalar_select %p1023, %s57, 1
        %s1025 = scalar_lea.vmem %s9, %s1024
        %p1026 = pneg %p314
        %p1027 = pneg %p311
        %p1028 = scmp.lt.s32.totalorder %s57, 1
        %s1029 = scalar_select %p1028, %s57, 1
        %s1030 = scalar_lea.vmem %s10, %s1029
        %p1031 = pneg %p340
        %p1032 = pneg %p337
        %p1033 = scmp.lt.s32.totalorder %s57, 1
        %s1034 = scalar_select %p1033, %s57, 1
        %s1035 = scalar_lea.vmem %s11, %s1034
        %p1036 = pneg %p366
        %p1037 = pneg %p363
        %p1038 = scmp.lt.s32.totalorder %s57, 1
        %s1039 = scalar_select %p1038, %s57, 1
        %s1040 = scalar_lea.vmem %s12, %s1039
        %p1041 = pneg %p392
        %p1042 = pneg %p389
        %p1043 = scmp.lt.s32.totalorder %s57, 1
        %s1044 = scalar_select %p1043, %s57, 1
        %s1045 = scalar_lea.vmem %s13, %s1044
        %p1046 = pneg %p418
        %p1047 = pneg %p415
        %p1048 = scmp.lt.s32.totalorder %s57, 1
        %s1049 = scalar_select %p1048, %s57, 1
        %s1050 = scalar_lea.vmem %s14, %s1049
        %p1051 = pneg %p444
        %p1052 = pneg %p441
        %p1053 = scmp.lt.s32.totalorder %s57, 1
        %s1054 = scalar_select %p1053, %s57, 1
        %s1055 = scalar_lea.vmem %s15, %s1054
        %p1056 = pneg %p470
        %p1057 = pneg %p467
        %s1058 = sand.u32 %s52, 1
        %s1059 = scalar_lea.sflag [#allocation16], %s1058
        %s1060 = sand.u32 %s483, 1
        %s1061 = smul.addr %s1060, 64
        %s1062 = scalar_lea.vmem [#allocation17], %s1061
        %p1063 = pneg %p496
        %p1064 = pneg %p493
        %p1065 = scmp.lt.s32.totalorder %s57, 1
        %s1066 = scalar_select %p1065, %s57, 1
        %s1067 = scalar_lea.vmem %s17, %s1066
        %p1068 = pneg %p522
        %p1069 = pneg %p519
        %s1070 = sand.u32 %s535, 1
        %s1071 = scalar_lea.sflag [#allocation19], %s1070
        %s1072 = sand.u32 %s535, 1
        %s1073 = smul.addr %s1072, 64
        %s1074 = scalar_lea.vmem [#allocation18], %s1073
        %p1075 = pneg %p548
        %p1076 = pneg %p545
        %p1077 = scmp.lt.s32.totalorder %s57, 1
        %s1078 = scalar_select %p1077, %s57, 1
        %s1079 = scalar_lea.vmem %s19, %s1078
        %p1080 = pneg %p574
        %p1081 = pneg %p571
        %p1082 = pneg %p600
        %p1083 = pneg %p597
        %s1084 = sand.u32 %s587, 1
        %s1085 = scalar_lea.sflag [#allocation5], %s1084
        %s1086 = sand.u32 %s587, 1
        %s1087 = smul.addr %s1086, 4
        %s1088 = scalar_lea.vmem [#allocation20], %s1087
        %p1089 = scmp.lt.s32.totalorder %s57, 1
        %s1090 = scalar_select %p1089, %s57, 1
        %s1091 = scalar_lea.vmem %s5, %s1090
        %p1092 = scmp.lt.s32.totalorder %s57, 1
        %s1093 = scalar_select %p1092, %s57, 1
        %s1094 = scalar_lea.vmem %s9, %s1093
        %p1095 = scmp.lt.s32.totalorder %s57, 1
        %s1096 = scalar_select %p1095, %s57, 1
        %s1097 = scalar_lea.vmem %s10, %s1096
        %p1098 = scmp.lt.s32.totalorder %s57, 1
        %s1099 = scalar_select %p1098, %s57, 1
        %s1100 = scalar_lea.vmem %s11, %s1099
        %p1101 = scmp.lt.s32.totalorder %s57, 1
        %s1102 = scalar_select %p1101, %s57, 1
        %s1103 = scalar_lea.vmem %s12, %s1102
        %p1104 = scmp.lt.s32.totalorder %s57, 1
        %s1105 = scalar_select %p1104, %s57, 1
        %s1106 = scalar_lea.vmem %s13, %s1105
        %p1107 = scmp.lt.s32.totalorder %s57, 1
        %s1108 = scalar_select %p1107, %s57, 1
        %s1109 = scalar_lea.vmem %s14, %s1108
        %p1110 = scmp.lt.s32.totalorder %s57, 1
        %s1111 = scalar_select %p1110, %s57, 1
        %s1112 = scalar_lea.vmem %s15, %s1111
        %p1113 = scmp.lt.s32.totalorder %s57, 1
        %s1114 = scalar_select %p1113, %s57, 1
        %s1115 = scalar_lea.vmem %s17, %s1114
        %p1116 = scmp.lt.s32.totalorder %s57, 1
        %s1117 = scalar_select %p1116, %s57, 1
        %s1118 = scalar_lea.vmem %s19, %s1117
        %v1120 = vld [vmem:[#allocation8] sm:$0xf]
        %v1121 = vld [vmem:[#allocation8 + $0x4] sm:$0xf]
        %v1122 = vld [vmem:[#allocation8 + $0x8] sm:$0xf]
        %v1123 = vld [vmem:[#allocation8 + $0xc] sm:$0xf]
        %v1124 = vld [vmem:[#allocation8 + $0x10] sm:$0xf]
        %v1125 = vld [vmem:[#allocation8 + $0x14] sm:$0xf]
        %v1126 = vld [vmem:[#allocation8 + $0x18] sm:$0xf]
        %v1127 = vld [vmem:[#allocation8 + $0x1c] sm:$0xf]
        %v1128 = vld [vmem:[#allocation8 + $0x20] sm:$0xf]
        %v1129 = vld [vmem:[#allocation8 + $0x24] sm:$0xf]
        %v1130 = vld [vmem:[#allocation8 + $0x28] sm:$0xf]
        %v1131 = vld [vmem:[#allocation8 + $0x2c] sm:$0xf]
        %v1132 = vld [vmem:[#allocation8 + $0x30] sm:$0xf]
        %v1133 = vld [vmem:[#allocation8 + $0x34] sm:$0xf]
        %v1134 = vld [vmem:[#allocation8 + $0x38] sm:$0xf]
        %v1135 = vld [vmem:[#allocation8 + $0x3c] sm:$0xf]
        %p1136 = scmp.eq.s32.totalorder %s57, 0
        // Predicated region
        $region141: #{tpu_custom_call.1} parent=99 // pred_check
          %p1137 = pneg %p1136
        $region142: #{tpu_custom_call.1} parent=99 // pred_check_branch
          %1139 = sbr.rel (%p1137) target = $region144
        $region143: #{tpu_custom_call.1} parent=99 // pred_region
          %v1140 = vld [vmem:[%s886] sm:$0xf]
          %v1141 = vunpack.c.l.bf16 %v1140
          %1142 = vst [vmem:[#allocation2] sm:$0xff] %v1141
        $region144: #{tpu_custom_call.1} parent=99 // pred_fallthru
          _
        %v1143 = vld [vmem:[#allocation2] sm:$0xff]
        %v1144 = vld [vmem:[%s895] sm:$0xf]
        %v1145 = vpack.c.bf16 %v1143, %v1143
        %v1146 = vld [vmem:[%s908] sm:$0xff]
        %v1147 = vld [vmem:[%s908 + $0x8] sm:$0xf]
        %v1148 = vld [vmem:[%s908 + $0xc] sm:$0xff]
        %v1149 = vld [vmem:[%s908 + $0x14] sm:$0xf]
        %v1150 = vld [vmem:[%s908 + $0x18] sm:$0xff]
        %v1151 = vld [vmem:[%s908 + $0x20] sm:$0xf]
        %v1152 = vld [vmem:[%s908 + $0x24] sm:$0xff]
        %v1153 = vld [vmem:[%s908 + $0x2c] sm:$0xf]
        %v1154 = vld [vmem:[%s908 + $0x30] sm:$0xff]
        %v1155 = vld [vmem:[%s908 + $0x38] sm:$0xf]
        %v1156 = vld [vmem:[%s908 + $0x3c] sm:$0xff]
        %v1157 = vld [vmem:[%s908 + $0x44] sm:$0xf]
        %v1158 = vld [vmem:[%s908 + $0x48] sm:$0xff]
        %v1159 = vld [vmem:[%s908 + $0x50] sm:$0xf]
        %v1160 = vld [vmem:[%s908 + $0x54] sm:$0xff]
        %v1161 = vld [vmem:[%s908 + $0x5c] sm:$0xf]
        %v1162 = vld [vmem:[%s908 + $0x60] sm:$0xff]
        %v1163 = vld [vmem:[%s908 + $0x68] sm:$0xf]
        %v1164 = vld [vmem:[%s908 + $0x6c] sm:$0xff]
        %v1165 = vld [vmem:[%s908 + $0x74] sm:$0xf]
        %v1166 = vld [vmem:[%s908 + $0x78] sm:$0xff]
        %v1167 = vld [vmem:[%s908 + $0x80] sm:$0xf]
        %v1168 = vld [vmem:[%s908 + $0x84] sm:$0xff]
        %v1169 = vld [vmem:[%s908 + $0x8c] sm:$0xf]
        %v1170 = vld [vmem:[%s908 + $0x90] sm:$0xff]
        %v1171 = vld [vmem:[%s908 + $0x98] sm:$0xf]
        %v1172 = vld [vmem:[%s908 + $0x9c] sm:$0xff]
        %v1173 = vld [vmem:[%s908 + $0xa4] sm:$0xf]
        %v1174 = vld [vmem:[%s908 + $0xa8] sm:$0xff]
        %v1175 = vld [vmem:[%s908 + $0xb0] sm:$0xf]
        %v1176 = vld [vmem:[%s908 + $0xb4] sm:$0xff]
        %v1177 = vld [vmem:[%s908 + $0xbc] sm:$0xf]
        %v1210 = vunpack.c.l.b16 %v1146
        %v1211 = vunpack.c.h.b16 %v1146
        %v1212 = vunpack.c.l.b16 %v1147
        %v1213 = vunpack.c.l.b16 %v1148
        %v1214 = vunpack.c.h.b16 %v1148
        %v1215 = vunpack.c.l.b16 %v1149
        %v1216 = vunpack.c.l.b16 %v1150
        %v1217 = vunpack.c.h.b16 %v1150
        %v1218 = vunpack.c.l.b16 %v1151
        %v1219 = vunpack.c.l.b16 %v1152
        %v1220 = vunpack.c.h.b16 %v1152
        %v1221 = vunpack.c.l.b16 %v1153
        %v1222 = vunpack.c.l.b16 %v1154
        %v1223 = vunpack.c.h.b16 %v1154
        %v1224 = vunpack.c.l.b16 %v1155
        %v1225 = vunpack.c.l.b16 %v1156
        %v1226 = vunpack.c.h.b16 %v1156
        %v1227 = vunpack.c.l.b16 %v1157
        %v1228 = vunpack.c.l.b16 %v1158
        %v1229 = vunpack.c.h.b16 %v1158
        %v1230 = vunpack.c.l.b16 %v1159
        %v1231 = vunpack.c.l.b16 %v1160
        %v1232 = vunpack.c.h.b16 %v1160
        %v1233 = vunpack.c.l.b16 %v1161
        %v1234 = vunpack.c.l.b16 %v1162
        %v1235 = vunpack.c.h.b16 %v1162
        %v1236 = vunpack.c.l.b16 %v1163
        %v1237 = vunpack.c.l.b16 %v1164
        %v1238 = vunpack.c.h.b16 %v1164
        %v1239 = vunpack.c.l.b16 %v1165
        %v1240 = vunpack.c.l.b16 %v1166
        %v1241 = vunpack.c.h.b16 %v1166
        %v1242 = vunpack.c.l.b16 %v1167
        %v1243 = vunpack.c.l.b16 %v1168
        %v1244 = vunpack.c.h.b16 %v1168
        %v1245 = vunpack.c.l.b16 %v1169
        %v1246 = vunpack.c.l.b16 %v1170
        %v1247 = vunpack.c.h.b16 %v1170
        %v1248 = vunpack.c.l.b16 %v1171
        %v1249 = vunpack.c.l.b16 %v1172
        %v1250 = vunpack.c.h.b16 %v1172
        %v1251 = vunpack.c.l.b16 %v1173
        %v1252 = vunpack.c.l.b16 %v1174
        %v1253 = vunpack.c.h.b16 %v1174
        %v1254 = vunpack.c.l.b16 %v1175
        %v1255 = vunpack.c.l.b16 %v1176
        %v1256 = vunpack.c.h.b16 %v1176
        %v1257 = vunpack.c.l.b16 %v1177
        %v1258 = vpack.c.b16 %v1213, %v1210
        %v1259 = vpack.c.b16 %v1214, %v1211
        %v1260 = vpack.c.b16 %v1215, %v1212
        %v1261 = vpack.c.b16 %v1219, %v1216
        %v1262 = vpack.c.b16 %v1220, %v1217
        %v1263 = vpack.c.b16 %v1221, %v1218
        %v1264 = vpack.c.b16 %v1225, %v1222
        %v1265 = vpack.c.b16 %v1226, %v1223
        %v1266 = vpack.c.b16 %v1227, %v1224
        %v1267 = vpack.c.b16 %v1231, %v1228
        %v1268 = vpack.c.b16 %v1232, %v1229
        %v1269 = vpack.c.b16 %v1233, %v1230
        %v1270 = vpack.c.b16 %v1237, %v1234
        %v1271 = vpack.c.b16 %v1238, %v1235
        %v1272 = vpack.c.b16 %v1239, %v1236
        %v1273 = vpack.c.b16 %v1243, %v1240
        %v1274 = vpack.c.b16 %v1244, %v1241
        %v1275 = vpack.c.b16 %v1245, %v1242
        %v1276 = vpack.c.b16 %v1249, %v1246
        %v1277 = vpack.c.b16 %v1250, %v1247
        %v1278 = vpack.c.b16 %v1251, %v1248
        %v1279 = vpack.c.b16 %v1255, %v1252
        %v1280 = vpack.c.b16 %v1256, %v1253
        %v1281 = vpack.c.b16 %v1257, %v1254
        %1306 = vmatprep.subr.bf16.mxu0 %v1259
        %1307 = vmatpush1.bf16.msra.mxu0 %v1258
        %1308 = vmatprep.subr.bf16.mxu0 %v1262
        %1309 = vmatpush1.bf16.msra.mxu0 %v1261
        %1310 = vmatprep.subr.bf16.mxu0 %v1265
        %1311 = vmatpush1.bf16.msra.mxu0 %v1264
        %1312 = vmatprep.subr.bf16.mxu0 %v1268
        %1313 = vmatpush1.bf16.msra.mxu0 %v1267
        %1314 = vmatprep.subr.bf16.mxu0 %v1271
        %1315 = vmatpush1.bf16.msra.mxu0 %v1270
        %1316 = vmatprep.subr.bf16.mxu0 %v1274
        %1317 = vmatpush1.bf16.msra.mxu0 %v1273
        %1318 = vmatprep.subr.bf16.mxu0 %v1277
        %1319 = vmatpush1.bf16.msra.mxu0 %v1276
        %1320 = vmatprep.subr.bf16.mxu0 %v1280
        %1321 = vmatpush1.bf16.msra.mxu0 %v1279
        %1322 = vmatprep.subr.bf16.mxu0 0
        %1323 = vmatpush1.bf16.msra.mxu0 0
        %1324 = vmatprep.subr.bf16.mxu0 0
        %1325 = vmatpush1.bf16.msra.mxu0 0
        %1326 = vmatprep.subr.bf16.mxu0 0
        %1327 = vmatpush1.bf16.msra.mxu0 0
        %1328 = vmatprep.subr.bf16.mxu0 0
        %1329 = vmatpush1.bf16.msra.mxu0 0
        %1330 = vmatprep.subr.bf16.mxu0 0
        %1331 = vmatpush1.bf16.msra.mxu0 0
        %1332 = vmatprep.subr.bf16.mxu0 0
        %1333 = vmatpush1.bf16.msra.mxu0 0
        %1334 = vmatprep.subr.bf16.mxu0 0
        %1335 = vmatpush1.bf16.msra.mxu0 0
        %1336 = vmatprep.subr.bf16.mxu0 0
        %1337 = vmatpush1.bf16.msra.mxu0 0
        %1338 = vmatprep.mubr.bf16.mxu0 0
        %1339 = vmatmul.mubr.bf16.gmra.mrb[0].mxu0 %v1145
        %v1340 = vpop.f32.mrb[0].mxu0
        %v1341 = vadd.f32 0.0, %v1340
        %v1342 = vpop.f32.mrb[0].mxu0
        %v1343 = vadd.f32 0.0, %v1342
        %v1344 = vpop.f32.mrb[0].mxu0
        %v1345 = vpop.f32.mrb[0].mxu0
        %1346 = vdwg.mxu0
        %1347 = vmatprep.subr.bf16.mxu0 0
        %1348 = vmatpush1.bf16.msra.mxu0 %v1260
        %1349 = vmatprep.subr.bf16.mxu0 0
        %1350 = vmatpush1.bf16.msra.mxu0 %v1263
        %1351 = vmatprep.subr.bf16.mxu0 0
        %1352 = vmatpush1.bf16.msra.mxu0 %v1266
        %1353 = vmatprep.subr.bf16.mxu0 0
        %1354 = vmatpush1.bf16.msra.mxu0 %v1269
        %1355 = vmatprep.subr.bf16.mxu0 0
        %1356 = vmatpush1.bf16.msra.mxu0 %v1272
        %1357 = vmatprep.subr.bf16.mxu0 0
        %1358 = vmatpush1.bf16.msra.mxu0 %v1275
        %1359 = vmatprep.subr.bf16.mxu0 0
        %1360 = vmatpush1.bf16.msra.mxu0 %v1278
        %1361 = vmatprep.subr.bf16.mxu0 0
        %1362 = vmatpush1.bf16.msra.mxu0 %v1281
        %1363 = vmatprep.subr.bf16.mxu0 0
        %1364 = vmatpush1.bf16.msra.mxu0 0
        %1365 = vmatprep.subr.bf16.mxu0 0
        %1366 = vmatpush1.bf16.msra.mxu0 0
        %1367 = vmatprep.subr.bf16.mxu0 0
        %1368 = vmatpush1.bf16.msra.mxu0 0
        %1369 = vmatprep.subr.bf16.mxu0 0
        %1370 = vmatpush1.bf16.msra.mxu0 0
        %1371 = vmatprep.subr.bf16.mxu0 0
        %1372 = vmatpush1.bf16.msra.mxu0 0
        %1373 = vmatprep.subr.bf16.mxu0 0
        %1374 = vmatpush1.bf16.msra.mxu0 0
        %1375 = vmatprep.subr.bf16.mxu0 0
        %1376 = vmatpush1.bf16.msra.mxu0 0
        %1377 = vmatprep.subr.bf16.mxu0 0
        %1378 = vmatpush1.bf16.msra.mxu0 0
        %1379 = vmatprep.mubr.bf16.mxu0 0
        %1380 = vmatmul.mubr.bf16.gmra.mrb[0].mxu0 %v1145
        %v1381 = vpop.f32.mrb[0].mxu0
        %v1382 = vadd.f32 0.0, %v1381
        %v1383 = vpop.f32.mrb[0].mxu0
        %v1384 = vpop.f32.mrb[0].mxu0
        %v1385 = vpop.f32.mrb[0].mxu0
        %1386 = vdwg.mxu0
        %v1387 = vld [vmem:[%s917] sm:$0xf]
        %v1388 = vld [vmem:[%s917 + $0x4] sm:$0xf]
        %v1389 = vld [vmem:[%s917 + $0x8] sm:$0xf]
        %v1390 = vld [vmem:[%s917 + $0xc] sm:$0xf]
        %v1391 = vld [vmem:[%s917 + $0x10] sm:$0xf]
        %v1392 = vld [vmem:[%s917 + $0x14] sm:$0xf]
        %v1393 = vld [vmem:[%s917 + $0x18] sm:$0xf]
        %v1394 = vld [vmem:[%s917 + $0x1c] sm:$0xf]
        %v1395 = vld [vmem:[%s917 + $0x20] sm:$0xf]
        %v1396 = vld [vmem:[%s917 + $0x24] sm:$0xf]
        %v1397 = vld [vmem:[%s917 + $0x28] sm:$0xf]
        %v1398 = vld [vmem:[%s917 + $0x2c] sm:$0xf]
        %v1399 = vld [vmem:[%s917 + $0x30] sm:$0xf]
        %v1400 = vld [vmem:[%s917 + $0x34] sm:$0xf]
        %v1401 = vld [vmem:[%s917 + $0x38] sm:$0xf]
        %v1402 = vld [vmem:[%s917 + $0x3c] sm:$0xf]
        %v1403 = vld [vmem:[%s1091] sm:$0x1]
        %v1404 = vmul.f32 %v1341, %v1343
        %v1405 = vmul.f32 %v1404, 0.17677669
        %v1406 = vpack.c.bf16 %v1405, %v1405
        %v1423 = vunpack.c.l.b16 %v1120
        %v1424 = vunpack.c.l.b16 %v1121
        %v1425 = vunpack.c.l.b16 %v1122
        %v1426 = vunpack.c.l.b16 %v1123
        %v1427 = vunpack.c.l.b16 %v1124
        %v1428 = vunpack.c.l.b16 %v1125
        %v1429 = vunpack.c.l.b16 %v1126
        %v1430 = vunpack.c.l.b16 %v1127
        %v1431 = vunpack.c.l.b16 %v1128
        %v1432 = vunpack.c.l.b16 %v1129
        %v1433 = vunpack.c.l.b16 %v1130
        %v1434 = vunpack.c.l.b16 %v1131
        %v1435 = vunpack.c.l.b16 %v1132
        %v1436 = vunpack.c.l.b16 %v1133
        %v1437 = vunpack.c.l.b16 %v1134
        %v1438 = vunpack.c.l.b16 %v1135
        %v1439 = vpack.c.b16 %v1424, %v1423
        %v1440 = vpack.c.b16 %v1426, %v1425
        %v1441 = vpack.c.b16 %v1428, %v1427
        %v1442 = vpack.c.b16 %v1430, %v1429
        %v1443 = vpack.c.b16 %v1432, %v1431
        %v1444 = vpack.c.b16 %v1434, %v1433
        %v1445 = vpack.c.b16 %v1436, %v1435
        %v1446 = vpack.c.b16 %v1438, %v1437
        %1455 = vmatprep.subr.bf16.mxu0 0
        %1456 = vmatpush1.bf16.msra.mxu0 %v1439
        %1457 = vmatprep.subr.bf16.mxu0 0
        %1458 = vmatpush1.bf16.msra.mxu0 %v1440
        %1459 = vmatprep.subr.bf16.mxu0 0
        %1460 = vmatpush1.bf16.msra.mxu0 %v1441
        %1461 = vmatprep.subr.bf16.mxu0 0
        %1462 = vmatpush1.bf16.msra.mxu0 %v1442
        %1463 = vmatprep.subr.bf16.mxu0 0
        %1464 = vmatpush1.bf16.msra.mxu0 %v1443
        %1465 = vmatprep.subr.bf16.mxu0 0
        %1466 = vmatpush1.bf16.msra.mxu0 %v1444
        %1467 = vmatprep.subr.bf16.mxu0 0
        %1468 = vmatpush1.bf16.msra.mxu0 %v1445
        %1469 = vmatprep.subr.bf16.mxu0 0
        %1470 = vmatpush1.bf16.msra.mxu0 %v1446
        %1471 = vmatprep.subr.bf16.mxu0 0
        %1472 = vmatpush1.bf16.msra.mxu0 0
        %1473 = vmatprep.subr.bf16.mxu0 0
        %1474 = vmatpush1.bf16.msra.mxu0 0
        %1475 = vmatprep.subr.bf16.mxu0 0
        %1476 = vmatpush1.bf16.msra.mxu0 0
        %1477 = vmatprep.subr.bf16.mxu0 0
        %1478 = vmatpush1.bf16.msra.mxu0 0
        %1479 = vmatprep.subr.bf16.mxu0 0
        %1480 = vmatpush1.bf16.msra.mxu0 0
        %1481 = vmatprep.subr.bf16.mxu0 0
        %1482 = vmatpush1.bf16.msra.mxu0 0
        %1483 = vmatprep.subr.bf16.mxu0 0
        %1484 = vmatpush1.bf16.msra.mxu0 0
        %1485 = vmatprep.subr.bf16.mxu0 0
        %1486 = vmatpush1.bf16.msra.mxu0 0
        %1487 = vmatprep.mubr.bf16.mxu0 0
        %1488 = vmatmul.mubr.bf16.gmra.mrb[0].mxu0 %v1406
        %v1489 = vpop.f32.mrb[0].mxu0
        %v1490 = vadd.f32 0.0, %v1489
        %v1491 = vpop.f32.mrb[0].mxu0
        %v1492 = vpop.f32.mrb[0].mxu0
        %v1493 = vpop.f32.mrb[0].mxu0
        %1494 = vdwg.mxu0
        %v1495 = vmul.f32 %v1490, 0.125
        %v1496 = vsub.f32 %v1405, %v1495
        %v1497 = vmul.f32 %v1496, 1.442695
        %v1498 = vpow.pop %v1497
        %v1499 = vpack.c.bf16 %v1498, %v1498
        %1500 = vmatprep.subr.bf16.mxu0 0
        %1501 = vmatpush1.bf16.msra.mxu0 %v1439
        %1502 = vmatprep.subr.bf16.mxu0 0
        %1503 = vmatpush1.bf16.msra.mxu0 %v1440
        %1504 = vmatprep.subr.bf16.mxu0 0
        %1505 = vmatpush1.bf16.msra.mxu0 %v1441
        %1506 = vmatprep.subr.bf16.mxu0 0
        %1507 = vmatpush1.bf16.msra.mxu0 %v1442
        %1508 = vmatprep.subr.bf16.mxu0 0
        %1509 = vmatpush1.bf16.msra.mxu0 %v1443
        %1510 = vmatprep.subr.bf16.mxu0 0
        %1511 = vmatpush1.bf16.msra.mxu0 %v1444
        %1512 = vmatprep.subr.bf16.mxu0 0
        %1513 = vmatpush1.bf16.msra.mxu0 %v1445
        %1514 = vmatprep.subr.bf16.mxu0 0
        %1515 = vmatpush1.bf16.msra.mxu0 %v1446
        %1516 = vmatprep.subr.bf16.mxu0 0
        %1517 = vmatpush1.bf16.msra.mxu0 0
        %1518 = vmatprep.subr.bf16.mxu0 0
        %1519 = vmatpush1.bf16.msra.mxu0 0
        %1520 = vmatprep.subr.bf16.mxu0 0
        %1521 = vmatpush1.bf16.msra.mxu0 0
        %1522 = vmatprep.subr.bf16.mxu0 0
        %1523 = vmatpush1.bf16.msra.mxu0 0
        %1524 = vmatprep.subr.bf16.mxu0 0
        %1525 = vmatpush1.bf16.msra.mxu0 0
        %1526 = vmatprep.subr.bf16.mxu0 0
        %1527 = vmatpush1.bf16.msra.mxu0 0
        %1528 = vmatprep.subr.bf16.mxu0 0
        %1529 = vmatpush1.bf16.msra.mxu0 0
        %1530 = vmatprep.subr.bf16.mxu0 0
        %1531 = vmatpush1.bf16.msra.mxu0 0
        %1532 = vmatprep.mubr.bf16.mxu0 0
        %1533 = vmatmul.mubr.bf16.gmra.mrb[0].mxu0 %v1499
        %v1534 = vpop.f32.mrb[0].mxu0
        %v1535 = vadd.f32 0.0, %v1534
        %v1536 = vpop.f32.mrb[0].mxu0
        %v1537 = vpop.f32.mrb[0].mxu0
        %v1538 = vpop.f32.mrb[0].mxu0
        %1539 = vdwg.mxu0
        %v1540 = vmax.f32 %v1535, 1e-06
        %v1541 = vrcp.pop %v1540
        %v1542 = vmul.f32 %v1498, %v1541
        %v1543 = vmul.f32 %v1382, %v1542
        %v1544 = vpack.c.bf16 %v1543, %v1543
        %v1546 = vlaneseq
        %v1547 = vshrl.u32 %v1546, 7
        %v1548 = vsub.s32 0, %v1547
        %v1549 = vrot.slane %v1403, %v1548
        %v1567 = vunpack.c.l.b16 %v1387
        %v1568 = vunpack.c.l.b16 %v1388
        %v1569 = vunpack.c.l.b16 %v1389
        %v1570 = vunpack.c.l.b16 %v1390
        %v1571 = vunpack.c.l.b16 %v1391
        %v1572 = vunpack.c.l.b16 %v1392
        %v1573 = vunpack.c.l.b16 %v1393
        %v1574 = vunpack.c.l.b16 %v1394
        %v1575 = vunpack.c.l.b16 %v1395
        %v1576 = vunpack.c.l.b16 %v1396
        %v1577 = vunpack.c.l.b16 %v1397
        %v1578 = vunpack.c.l.b16 %v1398
        %v1579 = vunpack.c.l.b16 %v1399
        %v1580 = vunpack.c.l.b16 %v1400
        %v1581 = vunpack.c.l.b16 %v1401
        %v1582 = vunpack.c.l.b16 %v1402
        %v1583 = vpack.c.b16 %v1568, %v1567
        %v1584 = vpack.c.b16 %v1570, %v1569
        %v1585 = vpack.c.b16 %v1572, %v1571
        %v1586 = vpack.c.b16 %v1574, %v1573
        %v1587 = vpack.c.b16 %v1576, %v1575
        %v1588 = vpack.c.b16 %v1578, %v1577
        %v1589 = vpack.c.b16 %v1580, %v1579
        %v1590 = vpack.c.b16 %v1582, %v1581
        %1599 = vmatprep.subr.bf16.mxu0 0
        %1600 = vmatpush1.bf16.msra.mxu0 %v1583
        %1601 = vmatprep.subr.bf16.mxu0 0
        %1602 = vmatpush1.bf16.msra.mxu0 %v1584
        %1603 = vmatprep.subr.bf16.mxu0 0
        %1604 = vmatpush1.bf16.msra.mxu0 %v1585
        %1605 = vmatprep.subr.bf16.mxu0 0
        %1606 = vmatpush1.bf16.msra.mxu0 %v1586
        %1607 = vmatprep.subr.bf16.mxu0 0
        %1608 = vmatpush1.bf16.msra.mxu0 %v1587
        %1609 = vmatprep.subr.bf16.mxu0 0
        %1610 = vmatpush1.bf16.msra.mxu0 %v1588
        %1611 = vmatprep.subr.bf16.mxu0 0
        %1612 = vmatpush1.bf16.msra.mxu0 %v1589
        %1613 = vmatprep.subr.bf16.mxu0 0
        %1614 = vmatpush1.bf16.msra.mxu0 %v1590
        %1615 = vmatprep.subr.bf16.mxu0 0
        %1616 = vmatpush1.bf16.msra.mxu0 0
        %1617 = vmatprep.subr.bf16.mxu0 0
        %1618 = vmatpush1.bf16.msra.mxu0 0
        %1619 = vmatprep.subr.bf16.mxu0 0
        %1620 = vmatpush1.bf16.msra.mxu0 0
        %1621 = vmatprep.subr.bf16.mxu0 0
        %1622 = vmatpush1.bf16.msra.mxu0 0
        %1623 = vmatprep.subr.bf16.mxu0 0
        %1624 = vmatpush1.bf16.msra.mxu0 0
        %1625 = vmatprep.subr.bf16.mxu0 0
        %1626 = vmatpush1.bf16.msra.mxu0 0
        %1627 = vmatprep.subr.bf16.mxu0 0
        %1628 = vmatpush1.bf16.msra.mxu0 0
        %1629 = vmatprep.subr.bf16.mxu0 0
        %1630 = vmatpush1.bf16.msra.mxu0 0
        %1631 = vmatprep.mubr.bf16.mxu0 0
        %1632 = vmatmul.mubr.bf16.gmra.mrb[0].mxu0 %v1544
        %v1633 = vpop.f32.mrb[0].mxu0
        %v1634 = vadd.f32 %v1549, %v1633
        %v1635 = vpop.f32.mrb[0].mxu0
        %v1636 = vpop.f32.mrb[0].mxu0
        %v1637 = vpop.f32.mrb[0].mxu0
        %1638 = vdwg.mxu0
        %v1639 = vld [vmem:[%s1097] sm:$0x1]
        %v1640 = vld [vmem:[%s1100] sm:$0x1]
        %v1641 = vadd.f32 %v1143, %v1634
        %1642 = vadd.xlane.f32.xlu0 %v1641
        %v1643 = vpop.xlane.xlu0 %1642
        %v1644 = vmul.f32 %v1643, 0.03125
        %v1645 = vsub.f32 %v1641, %v1644
        %v1646 = vmul.f32 %v1645, %v1645
        %1647 = vadd.xlane.f32.xlu0 %v1646
        %v1648 = vpop.xlane.xlu0 %1647
        %v1649 = vmul.f32 %v1644, %v1644
        %v1650 = vmul.f32 %v1649, 96.0
        %v1651 = vsub.f32 %v1648, %v1650
        %v1652 = vmul.f32 %v1651, 0.03125
        %v1653 = vadd.f32 %v1652, 1e-05
        %v1654 = vrsqrt.pop %v1653
        %v1655 = vmul.f32 %v1645, %v1654
        %v1657 = vlaneseq
        %v1658 = vshrl.u32 %v1657, 7
        %v1659 = vsub.s32 0, %v1658
        %v1660 = vrot.slane %v1639, %v1659
        %v1662 = vmul.f32 %v1655, %v1660
        %v1664 = vlaneseq
        %v1665 = vshrl.u32 %v1664, 7
        %v1666 = vsub.s32 0, %v1665
        %v1667 = vrot.slane %v1640, %v1666
        %v1669 = vadd.f32 %v1662, %v1667
        %v1670 = vpack.c.bf16 %v1669, %v1669
        %v1671 = vld [vmem:[%s926] sm:$0xf]
        %v1672 = vld [vmem:[%s926 + $0x4] sm:$0xf]
        %v1673 = vld [vmem:[%s926 + $0x8] sm:$0xf]
        %v1674 = vld [vmem:[%s926 + $0xc] sm:$0xf]
        %v1675 = vld [vmem:[%s926 + $0x10] sm:$0xf]
        %v1676 = vld [vmem:[%s926 + $0x14] sm:$0xf]
        %v1677 = vld [vmem:[%s926 + $0x18] sm:$0xf]
        %v1678 = vld [vmem:[%s926 + $0x1c] sm:$0xf]
        %v1679 = vld [vmem:[%s926 + $0x20] sm:$0xf]
        %v1680 = vld [vmem:[%s926 + $0x24] sm:$0xf]
        %v1681 = vld [vmem:[%s926 + $0x28] sm:$0xf]
        %v1682 = vld [vmem:[%s926 + $0x2c] sm:$0xf]
        %v1683 = vld [vmem:[%s926 + $0x30] sm:$0xf]
        %v1684 = vld [vmem:[%s926 + $0x34] sm:$0xf]
        %v1685 = vld [vmem:[%s926 + $0x38] sm:$0xf]
        %v1686 = vld [vmem:[%s926 + $0x3c] sm:$0xf]
        %v1703 = vunpack.c.l.b16 %v1671
        %v1704 = vunpack.c.l.b16 %v1672
        %v1705 = vunpack.c.l.b16 %v1673
        %v1706 = vunpack.c.l.b16 %v1674
        %v1707 = vunpack.c.l.b16 %v1675
        %v1708 = vunpack.c.l.b16 %v1676
        %v1709 = vunpack.c.l.b16 %v1677
        %v1710 = vunpack.c.l.b16 %v1678
        %v1711 = vunpack.c.l.b16 %v1679
        %v1712 = vunpack.c.l.b16 %v1680
        %v1713 = vunpack.c.l.b16 %v1681
        %v1714 = vunpack.c.l.b16 %v1682
        %v1715 = vunpack.c.l.b16 %v1683
        %v1716 = vunpack.c.l.b16 %v1684
        %v1717 = vunpack.c.l.b16 %v1685
        %v1718 = vunpack.c.l.b16 %v1686
        %v1719 = vpack.c.b16 %v1704, %v1703
        %v1720 = vpack.c.b16 %v1706, %v1705
        %v1721 = vpack.c.b16 %v1708, %v1707
        %v1722 = vpack.c.b16 %v1710, %v1709
        %v1723 = vpack.c.b16 %v1712, %v1711
        %v1724 = vpack.c.b16 %v1714, %v1713
        %v1725 = vpack.c.b16 %v1716, %v1715
        %v1726 = vpack.c.b16 %v1718, %v1717
        %1735 = vmatprep.subr.bf16.mxu0 0
        %1736 = vmatpush1.bf16.msra.mxu0 %v1719
        %1737 = vmatprep.subr.bf16.mxu0 0
        %1738 = vmatpush1.bf16.msra.mxu0 %v1720
        %1739 = vmatprep.subr.bf16.mxu0 0
        %1740 = vmatpush1.bf16.msra.mxu0 %v1721
        %1741 = vmatprep.subr.bf16.mxu0 0
        %1742 = vmatpush1.bf16.msra.mxu0 %v1722
        %1743 = vmatprep.subr.bf16.mxu0 0
        %1744 = vmatpush1.bf16.msra.mxu0 %v1723
        %1745 = vmatprep.subr.bf16.mxu0 0
        %1746 = vmatpush1.bf16.msra.mxu0 %v1724
        %1747 = vmatprep.subr.bf16.mxu0 0
        %1748 = vmatpush1.bf16.msra.mxu0 %v1725
        %1749 = vmatprep.subr.bf16.mxu0 0
        %1750 = vmatpush1.bf16.msra.mxu0 %v1726
        %1751 = vmatprep.subr.bf16.mxu0 0
        %1752 = vmatpush1.bf16.msra.mxu0 0
        %1753 = vmatprep.subr.bf16.mxu0 0
        %1754 = vmatpush1.bf16.msra.mxu0 0
        %1755 = vmatprep.subr.bf16.mxu0 0
        %1756 = vmatpush1.bf16.msra.mxu0 0
        %1757 = vmatprep.subr.bf16.mxu0 0
        %1758 = vmatpush1.bf16.msra.mxu0 0
        %1759 = vmatprep.subr.bf16.mxu0 0
        %1760 = vmatpush1.bf16.msra.mxu0 0
        %1761 = vmatprep.subr.bf16.mxu0 0
        %1762 = vmatpush1.bf16.msra.mxu0 0
        %1763 = vmatprep.subr.bf16.mxu0 0
        %1764 = vmatpush1.bf16.msra.mxu0 0
        %1765 = vmatprep.subr.bf16.mxu0 0
        %1766 = vmatpush1.bf16.msra.mxu0 0
        %1767 = vmatprep.mubr.bf16.mxu0 0
        %1768 = vmatmul.mubr.bf16.gmra.mrb[0].mxu0 %v1670
        %v1769 = vpop.f32.mrb[0].mxu0
        %v1770 = vadd.f32 0.0, %v1769
        %v1771 = vpop.f32.mrb[0].mxu0
        %v1772 = vpop.f32.mrb[0].mxu0
        %v1773 = vpop.f32.mrb[0].mxu0
        %1774 = vdwg.mxu0
        %v1775 = vld [vmem:[%s935] sm:$0xff]
        %v1776 = vld [vmem:[%s935 + $0x8] sm:$0xff]
        %v1777 = vld [vmem:[%s935 + $0x10] sm:$0xff]
        %v1778 = vld [vmem:[%s935 + $0x18] sm:$0xff]
        %v1779 = vld [vmem:[%s935 + $0x20] sm:$0xff]
        %v1780 = vld [vmem:[%s935 + $0x28] sm:$0xff]
        %v1781 = vld [vmem:[%s935 + $0x30] sm:$0xff]
        %v1782 = vld [vmem:[%s935 + $0x38] sm:$0xff]
        %v1783 = vld [vmem:[%s935 + $0x40] sm:$0xff]
        %v1784 = vld [vmem:[%s935 + $0x48] sm:$0xff]
        %v1785 = vld [vmem:[%s935 + $0x50] sm:$0xff]
        %v1786 = vld [vmem:[%s935 + $0x58] sm:$0xff]
        %v1787 = vld [vmem:[%s935 + $0x60] sm:$0xff]
        %v1788 = vld [vmem:[%s935 + $0x68] sm:$0xff]
        %v1789 = vld [vmem:[%s935 + $0x70] sm:$0xff]
        %v1790 = vld [vmem:[%s935 + $0x78] sm:$0xff]
        %v1807 = vunpack.c.l.b16 %v1775
        %v1808 = vunpack.c.h.b16 %v1775
        %v1809 = vunpack.c.l.b16 %v1776
        %v1810 = vunpack.c.h.b16 %v1776
        %v1811 = vunpack.c.l.b16 %v1777
        %v1812 = vunpack.c.h.b16 %v1777
        %v1813 = vunpack.c.l.b16 %v1778
        %v1814 = vunpack.c.h.b16 %v1778
        %v1815 = vunpack.c.l.b16 %v1779
        %v1816 = vunpack.c.h.b16 %v1779
        %v1817 = vunpack.c.l.b16 %v1780
        %v1818 = vunpack.c.h.b16 %v1780
        %v1819 = vunpack.c.l.b16 %v1781
        %v1820 = vunpack.c.h.b16 %v1781
        %v1821 = vunpack.c.l.b16 %v1782
        %v1822 = vunpack.c.h.b16 %v1782
        %v1823 = vunpack.c.l.b16 %v1783
        %v1824 = vunpack.c.h.b16 %v1783
        %v1825 = vunpack.c.l.b16 %v1784
        %v1826 = vunpack.c.h.b16 %v1784
        %v1827 = vunpack.c.l.b16 %v1785
        %v1828 = vunpack.c.h.b16 %v1785
        %v1829 = vunpack.c.l.b16 %v1786
        %v1830 = vunpack.c.h.b16 %v1786
        %v1831 = vunpack.c.l.b16 %v1787
        %v1832 = vunpack.c.h.b16 %v1787
        %v1833 = vunpack.c.l.b16 %v1788
        %v1834 = vunpack.c.h.b16 %v1788
        %v1835 = vunpack.c.l.b16 %v1789
        %v1836 = vunpack.c.h.b16 %v1789
        %v1837 = vunpack.c.l.b16 %v1790
        %v1838 = vunpack.c.h.b16 %v1790
        %v1839 = vpack.c.b16 %v1809, %v1807
        %v1840 = vpack.c.b16 %v1810, %v1808
        %v1841 = vpack.c.b16 %v1813, %v1811
        %v1842 = vpack.c.b16 %v1814, %v1812
        %v1843 = vpack.c.b16 %v1817, %v1815
        %v1844 = vpack.c.b16 %v1818, %v1816
        %v1845 = vpack.c.b16 %v1821, %v1819
        %v1846 = vpack.c.b16 %v1822, %v1820
        %v1847 = vpack.c.b16 %v1825, %v1823
        %v1848 = vpack.c.b16 %v1826, %v1824
        %v1849 = vpack.c.b16 %v1829, %v1827
        %v1850 = vpack.c.b16 %v1830, %v1828
        %v1851 = vpack.c.b16 %v1833, %v1831
        %v1852 = vpack.c.b16 %v1834, %v1832
        %v1853 = vpack.c.b16 %v1837, %v1835
        %v1854 = vpack.c.b16 %v1838, %v1836
        %1871 = vmatprep.subr.bf16.mxu0 %v1840
        %1872 = vmatpush1.bf16.msra.mxu0 %v1839
        %1873 = vmatprep.subr.bf16.mxu0 %v1842
        %1874 = vmatpush1.bf16.msra.mxu0 %v1841
        %1875 = vmatprep.subr.bf16.mxu0 %v1844
        %1876 = vmatpush1.bf16.msra.mxu0 %v1843
        %1877 = vmatprep.subr.bf16.mxu0 %v1846
        %1878 = vmatpush1.bf16.msra.mxu0 %v1845
        %1879 = vmatprep.subr.bf16.mxu0 %v1848
        %1880 = vmatpush1.bf16.msra.mxu0 %v1847
        %1881 = vmatprep.subr.bf16.mxu0 %v1850
        %1882 = vmatpush1.bf16.msra.mxu0 %v1849
        %1883 = vmatprep.subr.bf16.mxu0 %v1852
        %1884 = vmatpush1.bf16.msra.mxu0 %v1851
        %1885 = vmatprep.subr.bf16.mxu0 %v1854
        %1886 = vmatpush1.bf16.msra.mxu0 %v1853
        %1887 = vmatprep.subr.bf16.mxu0 0
        %1888 = vmatpush1.bf16.msra.mxu0 0
        %1889 = vmatprep.subr.bf16.mxu0 0
        %1890 = vmatpush1.bf16.msra.mxu0 0
        %1891 = vmatprep.subr.bf16.mxu0 0
        %1892 = vmatpush1.bf16.msra.mxu0 0
        %1893 = vmatprep.subr.bf16.mxu0 0
        %1894 = vmatpush1.bf16.msra.mxu0 0
        %1895 = vmatprep.subr.bf16.mxu0 0
        %1896 = vmatpush1.bf16.msra.mxu0 0
        %1897 = vmatprep.subr.bf16.mxu0 0
        %1898 = vmatpush1.bf16.msra.mxu0 0
        %1899 = vmatprep.subr.bf16.mxu0 0
        %1900 = vmatpush1.bf16.msra.mxu0 0
        %1901 = vmatprep.subr.bf16.mxu0 0
        %1902 = vmatpush1.bf16.msra.mxu0 0
        %1903 = vmatprep.mubr.bf16.mxu0 0
        %1904 = vmatmul.mubr.bf16.gmra.mrb[0].mxu0 %v1144
        %v1905 = vpop.f32.mrb[0].mxu0
        %v1906 = vadd.f32 0.0, %v1905
        %v1907 = vpop.f32.mrb[0].mxu0
        %v1908 = vadd.f32 0.0, %v1907
        %v1909 = vpop.f32.mrb[0].mxu0
        %v1910 = vpop.f32.mrb[0].mxu0
        %1911 = vdwg.mxu0
        %v1912 = vld [vmem:[%s944] sm:$0xf]
        %v1913 = vld [vmem:[%s944 + $0x4] sm:$0xf]
        %v1914 = vld [vmem:[%s944 + $0x8] sm:$0xf]
        %v1915 = vld [vmem:[%s944 + $0xc] sm:$0xf]
        %v1916 = vld [vmem:[%s944 + $0x10] sm:$0xf]
        %v1917 = vld [vmem:[%s944 + $0x14] sm:$0xf]
        %v1918 = vld [vmem:[%s944 + $0x18] sm:$0xf]
        %v1919 = vld [vmem:[%s944 + $0x1c] sm:$0xf]
        %v1920 = vld [vmem:[%s944 + $0x20] sm:$0xf]
        %v1921 = vld [vmem:[%s944 + $0x24] sm:$0xf]
        %v1922 = vld [vmem:[%s944 + $0x28] sm:$0xf]
        %v1923 = vld [vmem:[%s944 + $0x2c] sm:$0xf]
        %v1924 = vld [vmem:[%s944 + $0x30] sm:$0xf]
        %v1925 = vld [vmem:[%s944 + $0x34] sm:$0xf]
        %v1926 = vld [vmem:[%s944 + $0x38] sm:$0xf]
        %v1927 = vld [vmem:[%s944 + $0x3c] sm:$0xf]
        %v1928 = vld [vmem:[%s1094] sm:$0x1]
        %v1929 = vmul.f32 %v1770, %v1906
        %v1930 = vmul.f32 %v1929, 0.17677669
        %v1931 = vpack.c.bf16 %v1930, %v1930
        %1932 = vmatprep.subr.bf16.mxu0 0
        %1933 = vmatpush1.bf16.msra.mxu0 %v1439
        %1934 = vmatprep.subr.bf16.mxu0 0
        %1935 = vmatpush1.bf16.msra.mxu0 %v1440
        %1936 = vmatprep.subr.bf16.mxu0 0
        %1937 = vmatpush1.bf16.msra.mxu0 %v1441
        %1938 = vmatprep.subr.bf16.mxu0 0
        %1939 = vmatpush1.bf16.msra.mxu0 %v1442
        %1940 = vmatprep.subr.bf16.mxu0 0
        %1941 = vmatpush1.bf16.msra.mxu0 %v1443
        %1942 = vmatprep.subr.bf16.mxu0 0
        %1943 = vmatpush1.bf16.msra.mxu0 %v1444
        %1944 = vmatprep.subr.bf16.mxu0 0
        %1945 = vmatpush1.bf16.msra.mxu0 %v1445
        %1946 = vmatprep.subr.bf16.mxu0 0
        %1947 = vmatpush1.bf16.msra.mxu0 %v1446
        %1948 = vmatprep.subr.bf16.mxu0 0
        %1949 = vmatpush1.bf16.msra.mxu0 0
        %1950 = vmatprep.subr.bf16.mxu0 0
        %1951 = vmatpush1.bf16.msra.mxu0 0
        %1952 = vmatprep.subr.bf16.mxu0 0
        %1953 = vmatpush1.bf16.msra.mxu0 0
        %1954 = vmatprep.subr.bf16.mxu0 0
        %1955 = vmatpush1.bf16.msra.mxu0 0
        %1956 = vmatprep.subr.bf16.mxu0 0
        %1957 = vmatpush1.bf16.msra.mxu0 0
        %1958 = vmatprep.subr.bf16.mxu0 0
        %1959 = vmatpush1.bf16.msra.mxu0 0
        %1960 = vmatprep.subr.bf16.mxu0 0
        %1961 = vmatpush1.bf16.msra.mxu0 0
        %1962 = vmatprep.subr.bf16.mxu0 0
        %1963 = vmatpush1.bf16.msra.mxu0 0
        %1964 = vmatprep.mubr.bf16.mxu0 0
        %1965 = vmatmul.mubr.bf16.gmra.mrb[0].mxu0 %v1931
        %v1966 = vpop.f32.mrb[0].mxu0
        %v1967 = vadd.f32 0.0, %v1966
        %v1968 = vpop.f32.mrb[0].mxu0
        %v1969 = vpop.f32.mrb[0].mxu0
        %v1970 = vpop.f32.mrb[0].mxu0
        %1971 = vdwg.mxu0
        %v1972 = vmul.f32 %v1967, 0.125
        %v1973 = vsub.f32 %v1930, %v1972
        %v1974 = vmul.f32 %v1973, 1.442695
        %v1975 = vpow.pop %v1974
        %v1976 = vpack.c.bf16 %v1975, %v1975
        %1977 = vmatprep.subr.bf16.mxu0 0
        %1978 = vmatpush1.bf16.msra.mxu0 %v1439
        %1979 = vmatprep.subr.bf16.mxu0 0
        %1980 = vmatpush1.bf16.msra.mxu0 %v1440
        %1981 = vmatprep.subr.bf16.mxu0 0
        %1982 = vmatpush1.bf16.msra.mxu0 %v1441
        %1983 = vmatprep.subr.bf16.mxu0 0
        %1984 = vmatpush1.bf16.msra.mxu0 %v1442
        %1985 = vmatprep.subr.bf16.mxu0 0
        %1986 = vmatpush1.bf16.msra.mxu0 %v1443
        %1987 = vmatprep.subr.bf16.mxu0 0
        %1988 = vmatpush1.bf16.msra.mxu0 %v1444
        %1989 = vmatprep.subr.bf16.mxu0 0
        %1990 = vmatpush1.bf16.msra.mxu0 %v1445
        %1991 = vmatprep.subr.bf16.mxu0 0
        %1992 = vmatpush1.bf16.msra.mxu0 %v1446
        %1993 = vmatprep.subr.bf16.mxu0 0
        %1994 = vmatpush1.bf16.msra.mxu0 0
        %1995 = vmatprep.subr.bf16.mxu0 0
        %1996 = vmatpush1.bf16.msra.mxu0 0
        %1997 = vmatprep.subr.bf16.mxu0 0
        %1998 = vmatpush1.bf16.msra.mxu0 0
        %1999 = vmatprep.subr.bf16.mxu0 0
        %2000 = vmatpush1.bf16.msra.mxu0 0
        %2001 = vmatprep.subr.bf16.mxu0 0
        %2002 = vmatpush1.bf16.msra.mxu0 0
        %2003 = vmatprep.subr.bf16.mxu0 0
        %2004 = vmatpush1.bf16.msra.mxu0 0
        %2005 = vmatprep.subr.bf16.mxu0 0
        %2006 = vmatpush1.bf16.msra.mxu0 0
        %2007 = vmatprep.subr.bf16.mxu0 0
        %2008 = vmatpush1.bf16.msra.mxu0 0
        %2009 = vmatprep.mubr.bf16.mxu0 0
        %2010 = vmatmul.mubr.bf16.gmra.mrb[0].mxu0 %v1976
        %v2011 = vpop.f32.mrb[0].mxu0
        %v2012 = vadd.f32 0.0, %v2011
        %v2013 = vpop.f32.mrb[0].mxu0
        %v2014 = vpop.f32.mrb[0].mxu0
        %v2015 = vpop.f32.mrb[0].mxu0
        %2016 = vdwg.mxu0
        %v2017 = vmax.f32 %v2012, 1e-06
        %v2018 = vrcp.pop %v2017
        %v2019 = vmul.f32 %v1975, %v2018
        %v2020 = vmul.f32 %v1908, %v2019
        %v2021 = vpack.c.bf16 %v2020, %v2020
        %v2023 = vlaneseq
        %v2024 = vshrl.u32 %v2023, 7
        %v2025 = vsub.s32 0, %v2024
        %v2026 = vrot.slane %v1928, %v2025
        %v2044 = vunpack.c.l.b16 %v1912
        %v2045 = vunpack.c.l.b16 %v1913
        %v2046 = vunpack.c.l.b16 %v1914
        %v2047 = vunpack.c.l.b16 %v1915
        %v2048 = vunpack.c.l.b16 %v1916
        %v2049 = vunpack.c.l.b16 %v1917
        %v2050 = vunpack.c.l.b16 %v1918
        %v2051 = vunpack.c.l.b16 %v1919
        %v2052 = vunpack.c.l.b16 %v1920
        %v2053 = vunpack.c.l.b16 %v1921
        %v2054 = vunpack.c.l.b16 %v1922
        %v2055 = vunpack.c.l.b16 %v1923
        %v2056 = vunpack.c.l.b16 %v1924
        %v2057 = vunpack.c.l.b16 %v1925
        %v2058 = vunpack.c.l.b16 %v1926
        %v2059 = vunpack.c.l.b16 %v1927
        %v2060 = vpack.c.b16 %v2045, %v2044
        %v2061 = vpack.c.b16 %v2047, %v2046
        %v2062 = vpack.c.b16 %v2049, %v2048
        %v2063 = vpack.c.b16 %v2051, %v2050
        %v2064 = vpack.c.b16 %v2053, %v2052
        %v2065 = vpack.c.b16 %v2055, %v2054
        %v2066 = vpack.c.b16 %v2057, %v2056
        %v2067 = vpack.c.b16 %v2059, %v2058
        %2076 = vmatprep.subr.bf16.mxu0 0
        %2077 = vmatpush1.bf16.msra.mxu0 %v2060
        %2078 = vmatprep.subr.bf16.mxu0 0
        %2079 = vmatpush1.bf16.msra.mxu0 %v2061
        %2080 = vmatprep.subr.bf16.mxu0 0
        %2081 = vmatpush1.bf16.msra.mxu0 %v2062
        %2082 = vmatprep.subr.bf16.mxu0 0
        %2083 = vmatpush1.bf16.msra.mxu0 %v2063
        %2084 = vmatprep.subr.bf16.mxu0 0
        %2085 = vmatpush1.bf16.msra.mxu0 %v2064
        %2086 = vmatprep.subr.bf16.mxu0 0
        %2087 = vmatpush1.bf16.msra.mxu0 %v2065
        %2088 = vmatprep.subr.bf16.mxu0 0
        %2089 = vmatpush1.bf16.msra.mxu0 %v2066
        %2090 = vmatprep.subr.bf16.mxu0 0
        %2091 = vmatpush1.bf16.msra.mxu0 %v2067
        %2092 = vmatprep.subr.bf16.mxu0 0
        %2093 = vmatpush1.bf16.msra.mxu0 0
        %2094 = vmatprep.subr.bf16.mxu0 0
        %2095 = vmatpush1.bf16.msra.mxu0 0
        %2096 = vmatprep.subr.bf16.mxu0 0
        %2097 = vmatpush1.bf16.msra.mxu0 0
        %2098 = vmatprep.subr.bf16.mxu0 0
        %2099 = vmatpush1.bf16.msra.mxu0 0
        %2100 = vmatprep.subr.bf16.mxu0 0
        %2101 = vmatpush1.bf16.msra.mxu0 0
        %2102 = vmatprep.subr.bf16.mxu0 0
        %2103 = vmatpush1.bf16.msra.mxu0 0
        %2104 = vmatprep.subr.bf16.mxu0 0
        %2105 = vmatpush1.bf16.msra.mxu0 0
        %2106 = vmatprep.subr.bf16.mxu0 0
        %2107 = vmatpush1.bf16.msra.mxu0 0
        %2108 = vmatprep.mubr.bf16.mxu0 0
        %2109 = vmatmul.mubr.bf16.gmra.mrb[0].mxu0 %v2021
        %v2110 = vpop.f32.mrb[0].mxu0
        %v2111 = vadd.f32 %v2026, %v2110
        %v2112 = vpop.f32.mrb[0].mxu0
        %v2113 = vpop.f32.mrb[0].mxu0
        %v2114 = vpop.f32.mrb[0].mxu0
        %2115 = vdwg.mxu0
        %v2116 = vld [vmem:[%s1103] sm:$0x1]
        %v2117 = vld [vmem:[%s1106] sm:$0x1]
        %v2118 = vadd.f32 %v1669, %v2111
        %2119 = vadd.xlane.f32.xlu0 %v2118
        %v2120 = vpop.xlane.xlu0 %2119
        %v2121 = vmul.f32 %v2120, 0.03125
        %v2122 = vsub.f32 %v2118, %v2121
        %v2123 = vmul.f32 %v2122, %v2122
        %2124 = vadd.xlane.f32.xlu0 %v2123
        %v2125 = vpop.xlane.xlu0 %2124
        %v2126 = vmul.f32 %v2121, %v2121
        %v2127 = vmul.f32 %v2126, 96.0
        %v2128 = vsub.f32 %v2125, %v2127
        %v2129 = vmul.f32 %v2128, 0.03125
        %v2130 = vadd.f32 %v2129, 1e-05
        %v2131 = vrsqrt.pop %v2130
        %v2132 = vmul.f32 %v2122, %v2131
        %v2134 = vlaneseq
        %v2135 = vshrl.u32 %v2134, 7
        %v2136 = vsub.s32 0, %v2135
        %v2137 = vrot.slane %v2116, %v2136
        %v2139 = vmul.f32 %v2132, %v2137
        %v2141 = vlaneseq
        %v2142 = vshrl.u32 %v2141, 7
        %v2143 = vsub.s32 0, %v2142
        %v2144 = vrot.slane %v2117, %v2143
        %v2146 = vadd.f32 %v2139, %v2144
        %v2147 = vpack.c.bf16 %v2146, %v2146
        %v2148 = vld [vmem:[%s953] sm:$0xf]
        %v2149 = vld [vmem:[%s953 + $0x4] sm:$0xf]
        %v2150 = vld [vmem:[%s953 + $0x8] sm:$0xf]
        %v2151 = vld [vmem:[%s953 + $0xc] sm:$0xf]
        %v2152 = vld [vmem:[%s953 + $0x10] sm:$0xf]
        %v2153 = vld [vmem:[%s953 + $0x14] sm:$0xf]
        %v2154 = vld [vmem:[%s953 + $0x18] sm:$0xf]
        %v2155 = vld [vmem:[%s953 + $0x1c] sm:$0xf]
        %v2156 = vld [vmem:[%s953 + $0x20] sm:$0xf]
        %v2157 = vld [vmem:[%s953 + $0x24] sm:$0xf]
        %v2158 = vld [vmem:[%s953 + $0x28] sm:$0xf]
        %v2159 = vld [vmem:[%s953 + $0x2c] sm:$0xf]
        %v2160 = vld [vmem:[%s953 + $0x30] sm:$0xf]
        %v2161 = vld [vmem:[%s953 + $0x34] sm:$0xf]
        %v2162 = vld [vmem:[%s953 + $0x38] sm:$0xf]
        %v2163 = vld [vmem:[%s953 + $0x3c] sm:$0xf]
        %v2164 = vld [vmem:[%s1115] sm:$0x1]
        %v2166 = vlaneseq
        %v2167 = vshrl.u32 %v2166, 7
        %v2168 = vsub.s32 0, %v2167
        %v2169 = vrot.slane %v2164, %v2168
        %v2187 = vunpack.c.l.b16 %v2148
        %v2188 = vunpack.c.l.b16 %v2149
        %v2189 = vunpack.c.l.b16 %v2150
        %v2190 = vunpack.c.l.b16 %v2151
        %v2191 = vunpack.c.l.b16 %v2152
        %v2192 = vunpack.c.l.b16 %v2153
        %v2193 = vunpack.c.l.b16 %v2154
        %v2194 = vunpack.c.l.b16 %v2155
        %v2195 = vunpack.c.l.b16 %v2156
        %v2196 = vunpack.c.l.b16 %v2157
        %v2197 = vunpack.c.l.b16 %v2158
        %v2198 = vunpack.c.l.b16 %v2159
        %v2199 = vunpack.c.l.b16 %v2160
        %v2200 = vunpack.c.l.b16 %v2161
        %v2201 = vunpack.c.l.b16 %v2162
        %v2202 = vunpack.c.l.b16 %v2163
        %v2203 = vpack.c.b16 %v2188, %v2187
        %v2204 = vpack.c.b16 %v2190, %v2189
        %v2205 = vpack.c.b16 %v2192, %v2191
        %v2206 = vpack.c.b16 %v2194, %v2193
        %v2207 = vpack.c.b16 %v2196, %v2195
        %v2208 = vpack.c.b16 %v2198, %v2197
        %v2209 = vpack.c.b16 %v2200, %v2199
        %v2210 = vpack.c.b16 %v2202, %v2201
        %2219 = vmatprep.subr.bf16.mxu0 0
        %2220 = vmatpush1.bf16.msra.mxu0 %v2203
        %2221 = vmatprep.subr.bf16.mxu0 0
        %2222 = vmatpush1.bf16.msra.mxu0 %v2204
        %2223 = vmatprep.subr.bf16.mxu0 0
        %2224 = vmatpush1.bf16.msra.mxu0 %v2205
        %2225 = vmatprep.subr.bf16.mxu0 0
        %2226 = vmatpush1.bf16.msra.mxu0 %v2206
        %2227 = vmatprep.subr.bf16.mxu0 0
        %2228 = vmatpush1.bf16.msra.mxu0 %v2207
        %2229 = vmatprep.subr.bf16.mxu0 0
        %2230 = vmatpush1.bf16.msra.mxu0 %v2208
        %2231 = vmatprep.subr.bf16.mxu0 0
        %2232 = vmatpush1.bf16.msra.mxu0 %v2209
        %2233 = vmatprep.subr.bf16.mxu0 0
        %2234 = vmatpush1.bf16.msra.mxu0 %v2210
        %2235 = vmatprep.subr.bf16.mxu0 0
        %2236 = vmatpush1.bf16.msra.mxu0 0
        %2237 = vmatprep.subr.bf16.mxu0 0
        %2238 = vmatpush1.bf16.msra.mxu0 0
        %2239 = vmatprep.subr.bf16.mxu0 0
        %2240 = vmatpush1.bf16.msra.mxu0 0
        %2241 = vmatprep.subr.bf16.mxu0 0
        %2242 = vmatpush1.bf16.msra.mxu0 0
        %2243 = vmatprep.subr.bf16.mxu0 0
        %2244 = vmatpush1.bf16.msra.mxu0 0
        %2245 = vmatprep.subr.bf16.mxu0 0
        %2246 = vmatpush1.bf16.msra.mxu0 0
        %2247 = vmatprep.subr.bf16.mxu0 0
        %2248 = vmatpush1.bf16.msra.mxu0 0
        %2249 = vmatprep.subr.bf16.mxu0 0
        %2250 = vmatpush1.bf16.msra.mxu0 0
        %2251 = vmatprep.mubr.bf16.mxu0 0
        %2252 = vmatmul.mubr.bf16.gmra.mrb[0].mxu0 %v2147
        %v2253 = vpop.f32.mrb[0].mxu0
        %v2254 = vadd.f32 %v2169, %v2253
        %v2255 = vpop.f32.mrb[0].mxu0
        %v2256 = vpop.f32.mrb[0].mxu0
        %v2257 = vpop.f32.mrb[0].mxu0
        %2258 = vdwg.mxu0
        %v2259 = vmax.f32 %v2254, 0.0
        %v2260 = vpack.c.bf16 %v2259, %v2259
        %v2261 = vld [vmem:[%s962] sm:$0xf]
        %v2262 = vld [vmem:[%s962 + $0x4] sm:$0xf]
        %v2263 = vld [vmem:[%s962 + $0x8] sm:$0xf]
        %v2264 = vld [vmem:[%s962 + $0xc] sm:$0xf]
        %v2265 = vld [vmem:[%s962 + $0x10] sm:$0xf]
        %v2266 = vld [vmem:[%s962 + $0x14] sm:$0xf]
        %v2267 = vld [vmem:[%s962 + $0x18] sm:$0xf]
        %v2268 = vld [vmem:[%s962 + $0x1c] sm:$0xf]
        %v2269 = vld [vmem:[%s962 + $0x20] sm:$0xf]
        %v2270 = vld [vmem:[%s962 + $0x24] sm:$0xf]
        %v2271 = vld [vmem:[%s962 + $0x28] sm:$0xf]
        %v2272 = vld [vmem:[%s962 + $0x2c] sm:$0xf]
        %v2273 = vld [vmem:[%s962 + $0x30] sm:$0xf]
        %v2274 = vld [vmem:[%s962 + $0x34] sm:$0xf]
        %v2275 = vld [vmem:[%s962 + $0x38] sm:$0xf]
        %v2276 = vld [vmem:[%s962 + $0x3c] sm:$0xf]
        %v2277 = vld [vmem:[%s1118] sm:$0x1]
        %v2279 = vlaneseq
        %v2280 = vshrl.u32 %v2279, 7
        %v2281 = vsub.s32 0, %v2280
        %v2282 = vrot.slane %v2277, %v2281
        %v2300 = vunpack.c.l.b16 %v2261
        %v2301 = vunpack.c.l.b16 %v2262
        %v2302 = vunpack.c.l.b16 %v2263
        %v2303 = vunpack.c.l.b16 %v2264
        %v2304 = vunpack.c.l.b16 %v2265
        %v2305 = vunpack.c.l.b16 %v2266
        %v2306 = vunpack.c.l.b16 %v2267
        %v2307 = vunpack.c.l.b16 %v2268
        %v2308 = vunpack.c.l.b16 %v2269
        %v2309 = vunpack.c.l.b16 %v2270
        %v2310 = vunpack.c.l.b16 %v2271
        %v2311 = vunpack.c.l.b16 %v2272
        %v2312 = vunpack.c.l.b16 %v2273
        %v2313 = vunpack.c.l.b16 %v2274
        %v2314 = vunpack.c.l.b16 %v2275
        %v2315 = vunpack.c.l.b16 %v2276
        %v2316 = vpack.c.b16 %v2301, %v2300
        %v2317 = vpack.c.b16 %v2303, %v2302
        %v2318 = vpack.c.b16 %v2305, %v2304
        %v2319 = vpack.c.b16 %v2307, %v2306
        %v2320 = vpack.c.b16 %v2309, %v2308
        %v2321 = vpack.c.b16 %v2311, %v2310
        %v2322 = vpack.c.b16 %v2313, %v2312
        %v2323 = vpack.c.b16 %v2315, %v2314
        %2332 = vmatprep.subr.bf16.mxu0 0
        %2333 = vmatpush1.bf16.msra.mxu0 %v2316
        %2334 = vmatprep.subr.bf16.mxu0 0
        %2335 = vmatpush1.bf16.msra.mxu0 %v2317
        %2336 = vmatprep.subr.bf16.mxu0 0
        %2337 = vmatpush1.bf16.msra.mxu0 %v2318
        %2338 = vmatprep.subr.bf16.mxu0 0
        %2339 = vmatpush1.bf16.msra.mxu0 %v2319
        %2340 = vmatprep.subr.bf16.mxu0 0
        %2341 = vmatpush1.bf16.msra.mxu0 %v2320
        %2342 = vmatprep.subr.bf16.mxu0 0
        %2343 = vmatpush1.bf16.msra.mxu0 %v2321
        %2344 = vmatprep.subr.bf16.mxu0 0
        %2345 = vmatpush1.bf16.msra.mxu0 %v2322
        %2346 = vmatprep.subr.bf16.mxu0 0
        %2347 = vmatpush1.bf16.msra.mxu0 %v2323
        %2348 = vmatprep.subr.bf16.mxu0 0
        %2349 = vmatpush1.bf16.msra.mxu0 0
        %2350 = vmatprep.subr.bf16.mxu0 0
        %2351 = vmatpush1.bf16.msra.mxu0 0
        %2352 = vmatprep.subr.bf16.mxu0 0
        %2353 = vmatpush1.bf16.msra.mxu0 0
        %2354 = vmatprep.subr.bf16.mxu0 0
        %2355 = vmatpush1.bf16.msra.mxu0 0
        %2356 = vmatprep.subr.bf16.mxu0 0
        %2357 = vmatpush1.bf16.msra.mxu0 0
        %2358 = vmatprep.subr.bf16.mxu0 0
        %2359 = vmatpush1.bf16.msra.mxu0 0
        %2360 = vmatprep.subr.bf16.mxu0 0
        %2361 = vmatpush1.bf16.msra.mxu0 0
        %2362 = vmatprep.subr.bf16.mxu0 0
        %2363 = vmatpush1.bf16.msra.mxu0 0
        %2364 = vmatprep.mubr.bf16.mxu0 0
        %2365 = vmatmul.mubr.bf16.gmra.mrb[0].mxu0 %v2260
        %v2366 = vpop.f32.mrb[0].mxu0
        %v2367 = vadd.f32 %v2282, %v2366
        %v2368 = vpop.f32.mrb[0].mxu0
        %v2369 = vpop.f32.mrb[0].mxu0
        %v2370 = vpop.f32.mrb[0].mxu0
        %2371 = vdwg.mxu0
        %v2372 = vld [vmem:[%s1109] sm:$0x1]
        %v2373 = vld [vmem:[%s1112] sm:$0x1]
        %v2374 = vadd.f32 %v2146, %v2367
        %2375 = vadd.xlane.f32.xlu0 %v2374
        %v2376 = vpop.xlane.xlu0 %2375
        %v2377 = vmul.f32 %v2376, 0.03125
        %v2378 = vsub.f32 %v2374, %v2377
        %v2379 = vmul.f32 %v2378, %v2378
        %2380 = vadd.xlane.f32.xlu0 %v2379
        %v2381 = vpop.xlane.xlu0 %2380
        %v2382 = vmul.f32 %v2377, %v2377
        %v2383 = vmul.f32 %v2382, 96.0
        %v2384 = vsub.f32 %v2381, %v2383
        %v2385 = vmul.f32 %v2384, 0.03125
        %v2386 = vadd.f32 %v2385, 1e-05
        %v2387 = vrsqrt.pop %v2386
        %v2388 = vmul.f32 %v2378, %v2387
        %v2390 = vlaneseq
        %v2391 = vshrl.u32 %v2390, 7
        %v2392 = vsub.s32 0, %v2391
        %v2393 = vrot.slane %v2372, %v2392
        %v2395 = vmul.f32 %v2388, %v2393
        %v2397 = vlaneseq
        %v2398 = vshrl.u32 %v2397, 7
        %v2399 = vsub.s32 0, %v2398
        %v2400 = vrot.slane %v2373, %v2399
        %v2402 = vadd.f32 %v2395, %v2400
        %2403 = vst [vmem:[#allocation2] sm:$0xff] %v2402
        %p2404 = scmp.eq.s32.totalorder %s57, 1
        // Predicated region
        $region145: #{tpu_custom_call.1} parent=99 // pred_check
          %p2405 = pneg %p2404
        $region146: #{tpu_custom_call.1} parent=99 // pred_check_branch
          %2407 = sbr.rel (%p2405) target = $region148
        $region147: #{tpu_custom_call.1} parent=99 // pred_region
          %v2408 = vpack.c.bf16 %v2402, %v2402
          %2409 = vst [vmem:[%s1088] sm:$0xf] %v2408
        $region148: #{tpu_custom_call.1} parent=99 // pred_fallthru
          _
        %s2410 = sand.u32 %s587, 1
        %s2411 = scalar_lea.sflag [#allocation5], %s2410
        %s2412 = sand.u32 %s587, 1
        %s2413 = smul.addr %s2412, 4
        %s2414 = scalar_lea.vmem [#allocation20], %s2413
        // Predicated region
        $region149: #{tpu_custom_call.1} parent=99 // pred_check
          %p2415 = pneg %p597
        $region150: #{tpu_custom_call.1} parent=99 // pred_check_branch
          %2417 = sbr.rel (%p2415) target = $region152
        $region151: #{tpu_custom_call.1} parent=99 // pred_region
          %s2419 = ssub.s32 64, 64
          %2420 = vsyncadd %s2411, %s2419
          %s2421 = smul.addr %s56, 64
          %s2422 = scalar_lea.hbm %s20, %s2421
          %s2424 = sshll.u32 %s2414, 4
          %s2425 = int_to_ptr.vmem [resolvable:$true] %s2424
          %2427 = dma.vmem_to_hbm [thread:$0]  %s2425, 64, %s2422, %s2411
        $region152: #{tpu_custom_call.1} parent=99 // pred_fallthru
          _
      $region100: #{tpu_custom_call.1} parent=5 // pred_fallthru
        _
      %p2428 = scmp.le.s32.totalorder 2, %s47
      // Predicated region
      $region153: #{tpu_custom_call.1} parent=5 // pred_check
        %p2429 = pneg %p2428
      $region154: #{tpu_custom_call.1} parent=5 // pred_check_branch
        %2431 = sbr.rel (%p2429) target = $region156
      $region155: #{tpu_custom_call.1} parent=5 // pred_region
        %s2432 = ssub.s32 %s47, 2
        // Predicated region
        $region157: #{tpu_custom_call.1} parent=155 // pred_check
          %p2433 = pneg %p603
        $region158: #{tpu_custom_call.1} parent=155 // pred_check_branch
          %2435 = sbr.rel (%p2433) target = $region160
        $region159: #{tpu_custom_call.1} parent=155 // pred_region
          %s2436 = sand.u32 %s588, 1
          %s2437 = scalar_lea.sflag [#allocation5], %s2436
          %s2438 = sand.u32 %s588, 1
          %s2439 = smul.addr %s2438, 4
          %s2440 = scalar_lea.vmem [#allocation20], %s2439
          %2441 = dma.done %s2437, 64
        $region160: #{tpu_custom_call.1} parent=155 // pred_fallthru
          _
      $region156: #{tpu_custom_call.1} parent=5 // pred_fallthru
        _
    $region6: #{tpu_custom_call.1} parent=1 // loop_footer
      %s51 = sadd.s32 1, %s47
    $region7: #{tpu_custom_call.1} parent=1 // loop_footer_branch
      %46 = sbr.rel target = $region3
    $region8: #{tpu_custom_call.1} parent=1 // loop_exit
      _
    %2442 = vsyncpa [#allocation4], 1
    %s2443 = scalar_lea.sflag [#allocation4], 1
    %2444 = vsyncpa %s2443, 1
    %2445 = vsyncpa [#allocation7], 1
    %s2446 = scalar_lea.sflag [#allocation7], 1
    %2447 = vsyncpa %s2446, 1
    %2448 = vsyncpa [#allocation10], 1
    %s2449 = scalar_lea.sflag [#allocation10], 1
    %2450 = vsyncpa %s2449, 1
    %2451 = vsyncpa [#allocation13], 1
    %s2452 = scalar_lea.sflag [#allocation13], 1
    %2453 = vsyncpa %s2452, 1
    %2454 = vsyncpa [#allocation16], 1
    %s2455 = scalar_lea.sflag [#allocation16], 1
    %2456 = vsyncpa %s2455, 1
    %2457 = vsyncpa [#allocation19], 1
    %s2458 = scalar_lea.sflag [#allocation19], 1
    %2459 = vsyncpa %s2458, 1
    %2460 = vsyncpa [#allocation5], 1
    %s2461 = scalar_lea.sflag [#allocation5], 1
    %2462 = vsyncpa %s2461, 1

</llo_original>
